<compile_context>
chip_gen: v6e
topology: v6e:2x2x1
jax: 0.10.0
libtpu: 0.0.40
codegen_flags: <defaults>
</compile_context>

<pallas_src>
import jax
import jax.numpy as jnp
from jax.experimental import pallas as pl
from jax.experimental.pallas import tpu as pltpu


# --------------------------------------------------------------------------- #
# Glue (plain JAX): positional encoding, identical semantics to the PyTorch fn #
# --------------------------------------------------------------------------- #
def positional_encoding(positions, freqs):
    freq_bands = 2.0 ** jnp.arange(freqs, dtype=jnp.float32)          # (freqs,)
    pts = (positions[..., None] * freq_bands).reshape(
        positions.shape[:-1] + (freqs * positions.shape[-1],))        # (..., C*freqs)
    return jnp.concatenate([jnp.sin(pts), jnp.cos(pts)], axis=-1)     # (..., 2*C*freqs)


def _round_up(x, m):
    return (x + m - 1) // m * m


# --------------------------------------------------------------------------- #
# Pallas kernel: layers 1-2 on the MXU, 3-wide layer 3 on the VPU/XLU          #
# --------------------------------------------------------------------------- #
def _mlp_kernel(x_ref, vt_ref, w1_ref, b1_ref, w2_ref, b2_ref, w3h_ref, o_ref):
    # layer1 (bf16 MXU, f32 accumulate) + bias + ReLU
    h1 = jnp.dot(x_ref[...], w1_ref[...], preferred_element_type=jnp.float32)
    h1 = jnp.maximum(h1 + b1_ref[...], 0.0)
    # layer2 + ReLU
    h2 = jnp.dot(h1.astype(jnp.bfloat16), w2_ref[...],
                 preferred_element_type=jnp.float32)
    h2 = jnp.maximum(h2 + b2_ref[...], 0.0)
    # layer3: only 3 output columns -> keep it off the MXU. Three broadcast
    # multiplies (VPU) + lane reductions (XLU) against w3h rows (f32), then add
    # the precomputed view_in @ w3[C:, :] + b3 term streamed in as vt_ref.
    w3h = w3h_ref[...]                                  # (3, featureC), f32
    out_cols = o_ref.shape[-1]                          # 3 (static)
    cols = [jnp.sum(h2 * w3h[c, :][None, :], axis=-1, keepdims=True)
            for c in range(out_cols)]
    logits = jnp.concatenate(cols, axis=-1) + vt_ref[...]
    o_ref[...] = jax.nn.sigmoid(logits)


def mlp_head_pallas(mlp_in_b, view_term, w1_b, b1_r, w2_b, b2_r, w3h_t,
                    *, block_rows=1024):
    """mlp_in_b: (N, in_mlpC) bf16 rows.  view_term: (N, 3) f32, already
    contains view_in @ w3[C:, :] + b3.  Weights are cached, (in, out) bf16 for
    layers 1-2; w3h_t is w3[:C, :].T with shape (3, featureC), f32."""
    N, D1 = mlp_in_b.shape
    C = w1_b.shape[1]                   # featureC
    OUT = view_term.shape[1]            # 3

    # Row tile: big for grid-step amortization, but guarantee >= 2 grid steps
    # so the single "parallel" axis can shard across v7x's 2 TensorCores.
    half = _round_up(-(-N // 2), 16)
    BN = max(16, min(block_rows, half))
    grid = (pl.cdiv(N, BN),)

    full = lambda shape: pl.BlockSpec(shape, lambda i: (0, 0))

    flops = 2 * N * (D1 * C + C * C + C * OUT)
    bytes_accessed = (N * D1 * 2                       # bf16 mlp_in
                      + N * OUT * 4                    # f32 view_term in
                      + N * OUT * 4                    # f32 rgb out
                      + (D1 * C + C * C) * 2           # bf16 W1, W2
                      + (OUT * C + 2 * C) * 4)         # f32 W3-head, biases

    out = pl.pallas_call(
        _mlp_kernel,
        out_shape=jax.ShapeDtypeStruct((N, OUT), jnp.float32),
        grid_spec=pltpu.PrefetchScalarGridSpec(
            num_scalar_prefetch=0,
            grid=grid,
            in_specs=[
                pl.BlockSpec((BN, D1), lambda i: (i, 0)),    # mlp_in rows (bf16)
                pl.BlockSpec((BN, OUT), lambda i: (i, 0)),   # view_term rows (f32)
                full((D1, C)), full((1, C)),                 # W1, b1
                full((C, C)), full((1, C)),                  # W2, b2
                full((OUT, C)),                              # W3 head (transposed, f32)
            ],
            out_specs=pl.BlockSpec((BN, OUT), lambda i: (i, 0)),
        ),
        compiler_params=pltpu.CompilerParams(
            dimension_semantics=("parallel",)),
        cost_estimate=pl.CostEstimate(
            flops=flops,
            transcendentals=N * OUT,
            bytes_accessed=bytes_accessed),
    )(mlp_in_b, view_term, w1_b, b1_r, w2_b, b2_r, w3h_t)

    return out


# --------------------------------------------------------------------------- #
# Full module forward                                                          #
# --------------------------------------------------------------------------- #
class MLPRenderFeaTimeEmbedding:
    def __init__(self, key, inChanel, viewpe=6, feape=6, featureC=128):
        self.in_mlpC = 2 * feape * inChanel + inChanel
        self.in_view = 2 * viewpe * 3 + 3
        self.viewpe = viewpe
        self.feape = feape
        self.featureC = featureC

        k1, k2, k3, k4, k5 = jax.random.split(key, 5)

        def uinit(k, fan_in, shape):
            bound = 1.0 / jnp.sqrt(fan_in)
            return jax.random.uniform(k, shape, jnp.float32, -bound, bound)

        # weights stored as (in, out) so the kernel computes x @ W + b
        self.w1 = uinit(k1, self.in_mlpC, (self.in_mlpC, featureC))
        self.b1 = uinit(k2, self.in_mlpC, (featureC,))
        self.w2 = uinit(k3, featureC, (featureC, featureC))
        self.b2 = uinit(k4, featureC, (featureC,))
        self.w3 = uinit(k5, featureC + self.in_view,
                        (featureC + self.in_view, 3))
        self.b3 = jnp.zeros((3,), jnp.float32)   # torch.nn.init.constant_(bias, 0)

        # ---- cached kernel-side operands (built once, not per call) -------- #
        self.w1_b = self.w1.astype(jnp.bfloat16)
        self.w2_b = self.w2.astype(jnp.bfloat16)
        self.b1_r = self.b1.reshape(1, featureC).astype(jnp.float32)
        self.b2_r = self.b2.reshape(1, featureC).astype(jnp.float32)
        # Layer-3 split: h2 part stays in-kernel (VPU, f32, transposed to (3,C));
        # view part is folded into the XLA wrapper (fuses with the PE fusion).
        self.w3h_t = jnp.transpose(self.w3[:featureC, :])      # (3, featureC) f32
        self.w3v = self.w3[featureC:, :]                        # (in_view, 3) f32

    # ---- shared glue (positional encoding + concat; XLA fuses this) -------- #
    def _inputs(self, viewdirs, features):
        indata = [features]
        if self.feape > 0:
            indata.append(positional_encoding(features, self.feape))
        indata_view = [viewdirs]
        if self.viewpe > 0:
            indata_view.append(positional_encoding(viewdirs, self.viewpe))
        mlp_in = jnp.concatenate(indata, axis=-1)          # (N, in_mlpC)
        view_in = jnp.concatenate(indata_view, axis=-1)    # (N, in_view)
        return mlp_in, view_in

    def __call__(self, pts, viewdirs, features, time):
        # pts and time are unused by the forward pass (matches the PyTorch module:
        # forward never touches pts or time despite the class name).
        mlp_in, view_in = self._inputs(viewdirs, features)
        # Hoisted view contribution of layer 3 (fuses with PE/concat in XLA).
        view_term = view_in @ self.w3v + self.b3            # (N, 3) f32
        return mlp_head_pallas(mlp_in.astype(jnp.bfloat16), view_term,
                               self.w1_b, self.b1_r, self.w2_b, self.b2_r,
                               self.w3h_t)

    # pure-JAX f32 reference (exact module semantics)
    def reference(self, pts, viewdirs, features, time):
        mlp_in, view_in = self._inputs(viewdirs, features)
        h = jnp.maximum(mlp_in @ self.w1 + self.b1, 0.0)
        h = jnp.maximum(h @ self.w2 + self.b2, 0.0)
        cat = jnp.concatenate([h, view_in], axis=-1)
        return jax.nn.sigmoid(cat @ self.w3 + self.b3)

    # reference mirroring the kernel's numerics (bf16 operands on layers 1-2
    # with f32 accumulation; layer 3 fully f32, split into h2-part + view-part)
    def reference_kernel(self, pts, viewdirs, features, time):
        mlp_in, view_in = self._inputs(viewdirs, features)
        q = lambda a: a.astype(jnp.bfloat16).astype(jnp.float32)
        h = jnp.maximum(q(mlp_in) @ q(self.w1) + self.b1, 0.0)
        h = jnp.maximum(q(h) @ q(self.w2) + self.b2, 0.0)
        logits = h @ self.w3[:self.featureC, :] + (view_in @ self.w3v + self.b3)
        return jax.nn.sigmoid(logits)


# --------------------------------------------------------------------------- #
if __name__ == "__main__":
    key = jax.random.PRNGKey(0)
    kp, kv, kf, km = jax.random.split(key, 4)

    N = 600           # forces >= 2 grid steps and a ragged last tile
    inChanel = 8      # appearance feature channels

    pts = jax.random.normal(kp, (N, 3), jnp.float32)
    viewdirs = jax.random.normal(kv, (N, 3), jnp.float32)
    viewdirs = viewdirs / jnp.linalg.norm(viewdirs, axis=-1, keepdims=True)
    features = jax.random.normal(kf, (N, inChanel), jnp.float32)
    time = jnp.zeros((N, 1), jnp.float32)   # unused by forward (matches PyTorch)

    model = MLPRenderFeaTimeEmbedding(km, inChanel, viewpe=6, feape=6, featureC=128)

    rgb = jax.block_until_ready(model(pts, viewdirs, features, time))
    assert rgb.shape == (N, 3), rgb.shape

    # tight check vs a reference with the kernel's numerics
    ref_k = model.reference_kernel(pts, viewdirs, features, time)
    err_k = float(jnp.max(jnp.abs(rgb - ref_k)))
    assert err_k < 5e-3, f"kernel-matched reference mismatch: {err_k}"

    # loose check vs the full-f32 module semantics (bf16 quantization error only)
    ref_f = model.reference(pts, viewdirs, features, time)
    err_f = float(jnp.max(jnp.abs(rgb - ref_f)))
    assert err_f < 7.5e-2, f"f32 reference mismatch: {err_f}"

    print("KERNEL_OK")
</pallas_src>

<mosaic_0001>
module attributes {stable_mosaic.version = 11 : i64} {
  func.func @_mlp_kernel(%arg0: i32, %arg1: memref<304x104xbf16, #tpu.memory_space<vmem>>, %arg2: memref<304x3xf32, #tpu.memory_space<vmem>>, %arg3: memref<104x128xbf16, #tpu.memory_space<vmem>>, %arg4: memref<1x128xf32, #tpu.memory_space<vmem>>, %arg5: memref<128x128xbf16, #tpu.memory_space<vmem>>, %arg6: memref<1x128xf32, #tpu.memory_space<vmem>>, %arg7: memref<3x128xf32, #tpu.memory_space<vmem>>, %arg8: memref<304x3xf32, #tpu.memory_space<vmem>>) attributes {dimension_semantics = [#tpu.dimension_semantics<parallel>], iteration_bounds = array<i64: 2>, scalar_prefetch = 0 : i64, scratch_operands = 0 : i64, tpu.core_type = #tpu.core_type<tc>, window_params = [{transform_indices = @transform_0, window_bounds = array<i64: 304, 104>}, {transform_indices = @transform_1, window_bounds = array<i64: 304, 3>}, {pipeline_mode = #tpu.pipeline_mode<synchronous>, transform_indices = @transform_2, window_bounds = array<i64: 104, 128>}, {pipeline_mode = #tpu.pipeline_mode<synchronous>, transform_indices = @transform_3, window_bounds = array<i64: 1, 128>}, {pipeline_mode = #tpu.pipeline_mode<synchronous>, transform_indices = @transform_4, window_bounds = array<i64: 128, 128>}, {pipeline_mode = #tpu.pipeline_mode<synchronous>, transform_indices = @transform_5, window_bounds = array<i64: 1, 128>}, {pipeline_mode = #tpu.pipeline_mode<synchronous>, transform_indices = @transform_6, window_bounds = array<i64: 3, 128>}, {transform_indices = @transform_7, window_bounds = array<i64: 304, 3>}]} {
    %c0 = arith.constant 0 : index
    %c0_0 = arith.constant 0 : index
    %0 = vector.load %arg1[%c0, %c0_0] : memref<304x104xbf16, #tpu.memory_space<vmem>>, vector<304x104xbf16>
    %c0_1 = arith.constant 0 : index
    %c0_2 = arith.constant 0 : index
    %1 = vector.load %arg3[%c0_1, %c0_2] : memref<104x128xbf16, #tpu.memory_space<vmem>>, vector<104x128xbf16>
    %cst = arith.constant dense<0.000000e+00> : vector<304x128xf32>
    %2 = tpu.matmul %0, %1, %cst {dimension_numbers = #tpu.dot_dimension_numbers<[1], [0], [0], [1], [0, 0, 1, 1], [], []>} : vector<304x104xbf16>, vector<104x128xbf16>, vector<304x128xf32> -> vector<304x128xf32>
    %c0_3 = arith.constant 0 : index
    %c0_4 = arith.constant 0 : index
    %3 = vector.load %arg4[%c0_3, %c0_4] : memref<1x128xf32, #tpu.memory_space<vmem>>, vector<1x128xf32>
    %4 = vector.broadcast %3 : vector<1x128xf32> to vector<304x128xf32>
    %5 = arith.addf %2, %4 : vector<304x128xf32>
    %cst_5 = arith.constant 0.000000e+00 : f32
    %6 = vector.broadcast %cst_5 : f32 to vector<304x128xf32>
    %7 = arith.maximumf %5, %6 : vector<304x128xf32>
    %8 = arith.truncf %7 : vector<304x128xf32> to vector<304x128xbf16>
    %c0_6 = arith.constant 0 : index
    %c0_7 = arith.constant 0 : index
    %9 = vector.load %arg5[%c0_6, %c0_7] : memref<128x128xbf16, #tpu.memory_space<vmem>>, vector<128x128xbf16>
    %cst_8 = arith.constant dense<0.000000e+00> : vector<304x128xf32>
    %10 = tpu.matmul %8, %9, %cst_8 {dimension_numbers = #tpu.dot_dimension_numbers<[1], [0], [0], [1], [0, 0, 1, 1], [], []>} : vector<304x128xbf16>, vector<128x128xbf16>, vector<304x128xf32> -> vector<304x128xf32>
    %c0_9 = arith.constant 0 : index
    %c0_10 = arith.constant 0 : index
    %11 = vector.load %arg6[%c0_9, %c0_10] : memref<1x128xf32, #tpu.memory_space<vmem>>, vector<1x128xf32>
    %12 = vector.broadcast %11 : vector<1x128xf32> to vector<304x128xf32>
    %13 = arith.addf %10, %12 : vector<304x128xf32>
    %cst_11 = arith.constant 0.000000e+00 : f32
    %14 = vector.broadcast %cst_11 : f32 to vector<304x128xf32>
    %15 = arith.maximumf %13, %14 : vector<304x128xf32>
    %c0_12 = arith.constant 0 : index
    %c0_13 = arith.constant 0 : index
    %16 = vector.load %arg7[%c0_12, %c0_13] : memref<3x128xf32, #tpu.memory_space<vmem>>, vector<3x128xf32>
    %17 = vector.extract_strided_slice %16 {offsets = [0, 0], sizes = [1, 128], strides = [1, 1]} : vector<3x128xf32> to vector<1x128xf32>
    %18 = vector.shape_cast %17 : vector<1x128xf32> to vector<128xf32>
    %19 = vector.shape_cast %18 : vector<128xf32> to vector<1x128xf32>
    %20 = vector.broadcast %19 : vector<1x128xf32> to vector<304x128xf32>
    %21 = arith.mulf %15, %20 : vector<304x128xf32>
    %cst_14 = arith.constant dense<0.000000e+00> : vector<304xf32>
    %22 = vector.multi_reduction <add>, %21, %cst_14 [1] : vector<304x128xf32> to vector<304xf32>
    %23 = vector.shape_cast %22 : vector<304xf32> to vector<304x1xf32>
    %24 = vector.extract_strided_slice %16 {offsets = [1, 0], sizes = [1, 128], strides = [1, 1]} : vector<3x128xf32> to vector<1x128xf32>
    %25 = vector.shape_cast %24 : vector<1x128xf32> to vector<128xf32>
    %26 = vector.shape_cast %25 : vector<128xf32> to vector<1x128xf32>
    %27 = vector.broadcast %26 : vector<1x128xf32> to vector<304x128xf32>
    %28 = arith.mulf %15, %27 : vector<304x128xf32>
    %cst_15 = arith.constant dense<0.000000e+00> : vector<304xf32>
    %29 = vector.multi_reduction <add>, %28, %cst_15 [1] : vector<304x128xf32> to vector<304xf32>
    %30 = vector.shape_cast %29 : vector<304xf32> to vector<304x1xf32>
    %31 = vector.extract_strided_slice %16 {offsets = [2, 0], sizes = [1, 128], strides = [1, 1]} : vector<3x128xf32> to vector<1x128xf32>
    %32 = vector.shape_cast %31 : vector<1x128xf32> to vector<128xf32>
    %33 = vector.shape_cast %32 : vector<128xf32> to vector<1x128xf32>
    %34 = vector.broadcast %33 : vector<1x128xf32> to vector<304x128xf32>
    %35 = arith.mulf %15, %34 : vector<304x128xf32>
    %cst_16 = arith.constant dense<0.000000e+00> : vector<304xf32>
    %36 = vector.multi_reduction <add>, %35, %cst_16 [1] : vector<304x128xf32> to vector<304xf32>
    %37 = vector.shape_cast %36 : vector<304xf32> to vector<304x1xf32>
    %38 = tpu.concatenate %23, %30, %37 in 1 : vector<304x1xf32>, vector<304x1xf32>, vector<304x1xf32> -> vector<304x3xf32>
    %c0_17 = arith.constant 0 : index
    %c0_18 = arith.constant 0 : index
    %39 = vector.load %arg2[%c0_17, %c0_18] : memref<304x3xf32, #tpu.memory_space<vmem>>, vector<304x3xf32>
    %40 = arith.addf %38, %39 : vector<304x3xf32>
    %41 = arith.negf %40 : vector<304x3xf32>
    %42 = math.exp %41 : vector<304x3xf32>
    %cst_19 = arith.constant 1.000000e+00 : f32
    %43 = vector.broadcast %cst_19 : f32 to vector<304x3xf32>
    %44 = arith.addf %43, %42 : vector<304x3xf32>
    %45 = arith.divf %43, %44 : vector<304x3xf32>
    %c0_20 = arith.constant 0 : index
    %c0_21 = arith.constant 0 : index
    %46 = vector.load %arg8[%c0_20, %c0_21] : memref<304x3xf32, #tpu.memory_space<vmem>>, vector<304x3xf32>
    tpu.vector_store %arg8[%c0_20, %c0_21], %45 {strides = array<i32>} : memref<304x3xf32, #tpu.memory_space<vmem>>, vector<304x3xf32>,
    return
  }
  func.func @transform_0(%arg0: i32) -> (i32, i32) {
    %c0_i32 = arith.constant 0 : i32
    %c0_i32_0 = arith.constant 0 : i32
    return %arg0, %c0_i32 : i32, i32
  }
  func.func @transform_1(%arg0: i32) -> (i32, i32) {
    %c0_i32 = arith.constant 0 : i32
    %c0_i32_0 = arith.constant 0 : i32
    return %arg0, %c0_i32 : i32, i32
  }
  func.func @transform_2(%arg0: i32) -> (i32, i32) {
    %c0_i32 = arith.constant 0 : i32
    %c0_i32_0 = arith.constant 0 : i32
    %c0_i32_1 = arith.constant 0 : i32
    return %c0_i32, %c0_i32_0 : i32, i32
  }
  func.func @transform_3(%arg0: i32) -> (i32, i32) {
    %c0_i32 = arith.constant 0 : i32
    %c0_i32_0 = arith.constant 0 : i32
    %c0_i32_1 = arith.constant 0 : i32
    return %c0_i32, %c0_i32_0 : i32, i32
  }
  func.func @transform_4(%arg0: i32) -> (i32, i32) {
    %c0_i32 = arith.constant 0 : i32
    %c0_i32_0 = arith.constant 0 : i32
    %c0_i32_1 = arith.constant 0 : i32
    return %c0_i32, %c0_i32_0 : i32, i32
  }
  func.func @transform_5(%arg0: i32) -> (i32, i32) {
    %c0_i32 = arith.constant 0 : i32
    %c0_i32_0 = arith.constant 0 : i32
    %c0_i32_1 = arith.constant 0 : i32
    return %c0_i32, %c0_i32_0 : i32, i32
  }
  func.func @transform_6(%arg0: i32) -> (i32, i32) {
    %c0_i32 = arith.constant 0 : i32
    %c0_i32_0 = arith.constant 0 : i32
    %c0_i32_1 = arith.constant 0 : i32
    return %c0_i32, %c0_i32_0 : i32, i32
  }
  func.func @transform_7(%arg0: i32) -> (i32, i32) {
    %c0_i32 = arith.constant 0 : i32
    %c0_i32_0 = arith.constant 0 : i32
    return %arg0, %c0_i32 : i32, i32
  }
}

</mosaic_0001>

<llo_original>
// kernel: tpu_custom_call.1
$region0: #{tpu_custom_call.1}
  #allocation0 [shape = 'u32[]', space=smem, size = 0x4, offset = 0x4, fixed_abs, tag = 'smem constant byte address 0x4 - core index']
  #allocation1 [shape = 'u32[144,128]{1,0:T(1,128)}', space=vmem, size = 0x12000, scoped, tag = 'internal scratch']
  %s0 = inlined_call_operand.vmem [shape: bf16[600,104], index: 0, kind: input, shape index: {}]
  %s1 = inlined_call_operand.vmem [shape: f32[600,3], index: 1, kind: input, shape index: {}]
  %s2 = inlined_call_operand.vmem [shape: bf16[104,128], index: 2, kind: input, shape index: {}]
  %s3 = inlined_call_operand.vmem [shape: f32[1,128], index: 3, kind: input, shape index: {}]
  %s4 = inlined_call_operand.vmem [shape: bf16[128,128], index: 4, kind: input, shape index: {}]
  %s5 = inlined_call_operand.vmem [shape: f32[1,128], index: 5, kind: input, shape index: {}]
  %s6 = inlined_call_operand.vmem [shape: f32[3,128], index: 6, kind: input, shape index: {}]
  %s7 = inlined_call_operand.vmem [shape: f32[600,3], index: 7, kind: output, shape index: {}]
  %s8 = sld [smem:[#allocation0]]
  $region109: #{tpu_custom_call.1} parent=0
    _
  %s10 = ssub.s32 1, %s8
  %s11 = scalar_select 0, %s10, %s8
  $region1: #{tpu_custom_call.1} parent=0
    #allocation2 [shape = 'u8[311296]{0}', space=vmem, size = 0x4c000, scoped, tag = 'output window, operand 0']
    loop: start=0, step=1, limit=4
    $region2: #{tpu_custom_call.1} parent=1 // loop_pre_header
      _
    $region3: #{tpu_custom_call.1} parent=1 // loop_header
      %s13 = sphi 0, %s17
      %p14 = scmp.ge.s32.totalorder %s13, 4
      %s23 = sphi 0, %s25
      %s26 = sphi 0, %s23
      %s27 = sphi 0, %s26
      %s43 = sphi 0, %s27
      %s49 = sphi 0, %s51
      %s52 = sphi 0, %s49
      %s53 = sphi 0, %s52
      %s69 = sphi 0, %s53
      %s73 = sphi 0, %s73
      %s75 = sphi 0, %s73
      %s76 = sphi 0, %s75
      %s90 = sphi 0, %s76
      %s94 = sphi 0, %s94
      %s96 = sphi 0, %s94
      %s97 = sphi 0, %s96
      %s111 = sphi 0, %s97
      %s115 = sphi 0, %s115
      %s117 = sphi 0, %s115
      %s118 = sphi 0, %s117
      %s132 = sphi 0, %s118
      %s136 = sphi 0, %s136
      %s138 = sphi 0, %s136
      %s139 = sphi 0, %s138
      %s153 = sphi 0, %s139
      %s157 = sphi 0, %s157
      %s159 = sphi 0, %s157
      %s160 = sphi 0, %s159
      %s174 = sphi 0, %s160
      %s180 = sphi 0, %s182
      %s183 = sphi 0, %s180
      %s184 = sphi 0, %s183
      %s200 = sphi 0, %s184
    $region4: #{tpu_custom_call.1} parent=1 // loop_header_branch
      %16 = sbr.rel (%p14) target = $region8
    $region5: #{tpu_custom_call.1} parent=1 // loop_body
      %s18 = ssub.s32 %s13, 1
      %s19 = ssub.s32 %s13, 2
      %s20 = sadd.s32 %s13, 1
      %s21 = ssub.s32 %s13, %s20
      %p22 = scmp.eq.s32.totalorder %s21, 0
      %s24 = sadd.s32 %s23, 1
      %s25 = scalar_select %p22, %s23, %s24
      %p28 = pneg %p22
      %p29 = scmp.eq.s32.totalorder %s13, 1
      %p30 = por %p28, %p29
      %p31 = scmp.ne.s32.totalorder %s23, %s26
      %p32 = scmp.eq.s32.totalorder %s13, 0
      %p33 = por %p31, %p32
      %p34 = scmp.ne.s32.totalorder %s23, %s26
      %p35 = scmp.eq.s32.totalorder %s18, 1
      %p36 = por %p34, %p35
      %p37 = scmp.ne.s32.totalorder %s26, %s27
      %p38 = scmp.eq.s32.totalorder %s18, 0
      %p39 = por %p37, %p38
      %p40 = scmp.ne.s32.totalorder %s26, %s27
      %p41 = scmp.eq.s32.totalorder %s19, 1
      %p42 = por %p40, %p41
      %p44 = scmp.ne.s32.totalorder %s27, %s43
      %p45 = scmp.eq.s32.totalorder %s19, 0
      %p46 = por %p44, %p45
      %s47 = ssub.s32 %s13, %s20
      %p48 = scmp.eq.s32.totalorder %s47, 0
      %s50 = sadd.s32 %s49, 1
      %s51 = scalar_select %p48, %s49, %s50
      %p54 = pneg %p48
      %p55 = scmp.eq.s32.totalorder %s13, 1
      %p56 = por %p54, %p55
      %p57 = scmp.ne.s32.totalorder %s49, %s52
      %p58 = scmp.eq.s32.totalorder %s13, 0
      %p59 = por %p57, %p58
      %p60 = scmp.ne.s32.totalorder %s49, %s52
      %p61 = scmp.eq.s32.totalorder %s18, 1
      %p62 = por %p60, %p61
      %p63 = scmp.ne.s32.totalorder %s52, %s53
      %p64 = scmp.eq.s32.totalorder %s18, 0
      %p65 = por %p63, %p64
      %p66 = scmp.ne.s32.totalorder %s52, %s53
      %p67 = scmp.eq.s32.totalorder %s19, 1
      %p68 = por %p66, %p67
      %p70 = scmp.ne.s32.totalorder %s53, %s69
      %p71 = scmp.eq.s32.totalorder %s19, 0
      %p72 = por %p70, %p71
      %s74 = sadd.s32 %s73, 1
      %p77 = scmp.eq.s32.totalorder %s13, 1
      %p78 = scmp.ne.s32.totalorder %s73, %s75
      %p79 = scmp.eq.s32.totalorder %s13, 0
      %p80 = por %p78, %p79
      %p81 = scmp.ne.s32.totalorder %s73, %s75
      %p82 = scmp.eq.s32.totalorder %s18, 1
      %p83 = por %p81, %p82
      %p84 = scmp.ne.s32.totalorder %s75, %s76
      %p85 = scmp.eq.s32.totalorder %s18, 0
      %p86 = por %p84, %p85
      %p87 = scmp.ne.s32.totalorder %s75, %s76
      %p88 = scmp.eq.s32.totalorder %s19, 1
      %p89 = por %p87, %p88
      %p91 = scmp.ne.s32.totalorder %s76, %s90
      %p92 = scmp.eq.s32.totalorder %s19, 0
      %p93 = por %p91, %p92
      %s95 = sadd.s32 %s94, 1
      %p98 = scmp.eq.s32.totalorder %s13, 1
      %p99 = scmp.ne.s32.totalorder %s94, %s96
      %p100 = scmp.eq.s32.totalorder %s13, 0
      %p101 = por %p99, %p100
      %p102 = scmp.ne.s32.totalorder %s94, %s96
      %p103 = scmp.eq.s32.totalorder %s18, 1
      %p104 = por %p102, %p103
      %p105 = scmp.ne.s32.totalorder %s96, %s97
      %p106 = scmp.eq.s32.totalorder %s18, 0
      %p107 = por %p105, %p106
      %p108 = scmp.ne.s32.totalorder %s96, %s97
      %p109 = scmp.eq.s32.totalorder %s19, 1
      %p110 = por %p108, %p109
      %p112 = scmp.ne.s32.totalorder %s97, %s111
      %p113 = scmp.eq.s32.totalorder %s19, 0
      %p114 = por %p112, %p113
      %s116 = sadd.s32 %s115, 1
      %p119 = scmp.eq.s32.totalorder %s13, 1
      %p120 = scmp.ne.s32.totalorder %s115, %s117
      %p121 = scmp.eq.s32.totalorder %s13, 0
      %p122 = por %p120, %p121
      %p123 = scmp.ne.s32.totalorder %s115, %s117
      %p124 = scmp.eq.s32.totalorder %s18, 1
      %p125 = por %p123, %p124
      %p126 = scmp.ne.s32.totalorder %s117, %s118
      %p127 = scmp.eq.s32.totalorder %s18, 0
      %p128 = por %p126, %p127
      %p129 = scmp.ne.s32.totalorder %s117, %s118
      %p130 = scmp.eq.s32.totalorder %s19, 1
      %p131 = por %p129, %p130
      %p133 = scmp.ne.s32.totalorder %s118, %s132
      %p134 = scmp.eq.s32.totalorder %s19, 0
      %p135 = por %p133, %p134
      %s137 = sadd.s32 %s136, 1
      %p140 = scmp.eq.s32.totalorder %s13, 1
      %p141 = scmp.ne.s32.totalorder %s136, %s138
      %p142 = scmp.eq.s32.totalorder %s13, 0
      %p143 = por %p141, %p142
      %p144 = scmp.ne.s32.totalorder %s136, %s138
      %p145 = scmp.eq.s32.totalorder %s18, 1
      %p146 = por %p144, %p145
      %p147 = scmp.ne.s32.totalorder %s138, %s139
      %p148 = scmp.eq.s32.totalorder %s18, 0
      %p149 = por %p147, %p148
      %p150 = scmp.ne.s32.totalorder %s138, %s139
      %p151 = scmp.eq.s32.totalorder %s19, 1
      %p152 = por %p150, %p151
      %p154 = scmp.ne.s32.totalorder %s139, %s153
      %p155 = scmp.eq.s32.totalorder %s19, 0
      %p156 = por %p154, %p155
      %s158 = sadd.s32 %s157, 1
      %p161 = scmp.eq.s32.totalorder %s13, 1
      %p162 = scmp.ne.s32.totalorder %s157, %s159
      %p163 = scmp.eq.s32.totalorder %s13, 0
      %p164 = por %p162, %p163
      %p165 = scmp.ne.s32.totalorder %s157, %s159
      %p166 = scmp.eq.s32.totalorder %s18, 1
      %p167 = por %p165, %p166
      %p168 = scmp.ne.s32.totalorder %s159, %s160
      %p169 = scmp.eq.s32.totalorder %s18, 0
      %p170 = por %p168, %p169
      %p171 = scmp.ne.s32.totalorder %s159, %s160
      %p172 = scmp.eq.s32.totalorder %s19, 1
      %p173 = por %p171, %p172
      %p175 = scmp.ne.s32.totalorder %s160, %s174
      %p176 = scmp.eq.s32.totalorder %s19, 0
      %p177 = por %p175, %p176
      %s178 = ssub.s32 %s13, %s20
      %p179 = scmp.eq.s32.totalorder %s178, 0
      %s181 = sadd.s32 %s180, 1
      %s182 = scalar_select %p179, %s180, %s181
      %p185 = pneg %p179
      %p186 = scmp.eq.s32.totalorder %s13, 1
      %p187 = por %p185, %p186
      %p188 = scmp.ne.s32.totalorder %s180, %s183
      %p189 = scmp.eq.s32.totalorder %s13, 0
      %p190 = por %p188, %p189
      %p191 = scmp.ne.s32.totalorder %s180, %s183
      %p192 = scmp.eq.s32.totalorder %s18, 1
      %p193 = por %p191, %p192
      %p194 = scmp.ne.s32.totalorder %s183, %s184
      %p195 = scmp.eq.s32.totalorder %s18, 0
      %p196 = por %p194, %p195
      %p197 = scmp.ne.s32.totalorder %s183, %s184
      %p198 = scmp.eq.s32.totalorder %s19, 1
      %p199 = por %p197, %p198
      %p201 = scmp.ne.s32.totalorder %s184, %s200
      %p202 = scmp.eq.s32.totalorder %s19, 0
      %p203 = por %p201, %p202
      %p204 = scmp.le.s32.totalorder 1, %s13
      %p205 = scmp.lt.s32.totalorder %s13, 3
      %p206 = pnand %p204, %p205
      %p207 = pneg %p206
      // Predicated region
      $region9: #{tpu_custom_call.1} parent=5 // pred_check
        _
      $region10: #{tpu_custom_call.1} parent=5 // pred_check_branch
        %209 = sbr.rel (%p206) target = $region12
      $region11: #{tpu_custom_call.1} parent=5 // pred_region
        %s210 = ssub.s32 %s13, 1
        // Predicated region
        $region13: #{tpu_custom_call.1} parent=11 // pred_check
          %p211 = pneg %p86
        $region14: #{tpu_custom_call.1} parent=11 // pred_check_branch
          %213 = sbr.rel (%p211) target = $region16
        $region15: #{tpu_custom_call.1} parent=11 // pred_region
          _
        $region16: #{tpu_custom_call.1} parent=11 // pred_fallthru
          _
        // Predicated region
        $region17: #{tpu_custom_call.1} parent=11 // pred_check
          %p214 = pneg %p107
        $region18: #{tpu_custom_call.1} parent=11 // pred_check_branch
          %216 = sbr.rel (%p214) target = $region20
        $region19: #{tpu_custom_call.1} parent=11 // pred_region
          _
        $region20: #{tpu_custom_call.1} parent=11 // pred_fallthru
          _
        // Predicated region
        $region21: #{tpu_custom_call.1} parent=11 // pred_check
          %p217 = pneg %p128
        $region22: #{tpu_custom_call.1} parent=11 // pred_check_branch
          %219 = sbr.rel (%p217) target = $region24
        $region23: #{tpu_custom_call.1} parent=11 // pred_region
          _
        $region24: #{tpu_custom_call.1} parent=11 // pred_fallthru
          _
        // Predicated region
        $region25: #{tpu_custom_call.1} parent=11 // pred_check
          %p220 = pneg %p149
        $region26: #{tpu_custom_call.1} parent=11 // pred_check_branch
          %222 = sbr.rel (%p220) target = $region28
        $region27: #{tpu_custom_call.1} parent=11 // pred_region
          _
        $region28: #{tpu_custom_call.1} parent=11 // pred_fallthru
          _
        // Predicated region
        $region29: #{tpu_custom_call.1} parent=11 // pred_check
          %p223 = pneg %p170
        $region30: #{tpu_custom_call.1} parent=11 // pred_check_branch
          %225 = sbr.rel (%p223) target = $region32
        $region31: #{tpu_custom_call.1} parent=11 // pred_region
          _
        $region32: #{tpu_custom_call.1} parent=11 // pred_fallthru
          _
      $region12: #{tpu_custom_call.1} parent=5 // pred_fallthru
        _
      %p226 = scmp.lt.s32.totalorder %s13, 2
      // Predicated region
      $region33: #{tpu_custom_call.1} parent=5 // pred_check
        %p227 = pneg %p226
      $region34: #{tpu_custom_call.1} parent=5 // pred_check_branch
        %229 = sbr.rel (%p227) target = $region36
      $region35: #{tpu_custom_call.1} parent=5 // pred_region
        // Predicated region
        $region37: #{tpu_custom_call.1} parent=35 // pred_check
          %p230 = pneg %p33
        $region38: #{tpu_custom_call.1} parent=35 // pred_check_branch
          %232 = sbr.rel (%p230) target = $region40
        $region39: #{tpu_custom_call.1} parent=35 // pred_region
          %s233 = smul.u32 38, %s13
          %s234 = ssub.s32 75, %s233
          %p235 = scmp.lt.s32.totalorder %s234, 38
          %s236 = scalar_select %p235, %s234, 38
          %s237 = smul.u32 64, %s236
          %p238 = scmp.lt.s32.totalorder %s233, 74
          %s239 = scalar_select %p238, %s233, 74
          %s240 = smul.addr %s239, 4
          %s241 = scalar_lea.vmem %s0, %s240
          %s242 = smul.u32 38, %s13
          %s243 = ssub.s32 75, %s242
          %p244 = scmp.lt.s32.totalorder %s243, 38
          %s245 = scalar_select %p244, %s243, 38
          %s246 = smul.u32 64, %s245
        $region40: #{tpu_custom_call.1} parent=35 // pred_fallthru
          _
        // Predicated region
        $region41: #{tpu_custom_call.1} parent=35 // pred_check
          %p247 = pneg %p59
        $region42: #{tpu_custom_call.1} parent=35 // pred_check_branch
          %249 = sbr.rel (%p247) target = $region44
        $region43: #{tpu_custom_call.1} parent=35 // pred_region
          %s250 = smul.u32 38, %s13
          %s251 = ssub.s32 75, %s250
          %p252 = scmp.lt.s32.totalorder %s251, 38
          %s253 = scalar_select %p252, %s251, 38
          %s254 = smul.u32 128, %s253
          %p255 = scmp.lt.s32.totalorder %s250, 74
          %s256 = scalar_select %p255, %s250, 74
          %s257 = smul.addr %s256, 8
          %s258 = scalar_lea.vmem %s1, %s257
          %s259 = smul.u32 38, %s13
          %s260 = ssub.s32 75, %s259
          %p261 = scmp.lt.s32.totalorder %s260, 38
          %s262 = scalar_select %p261, %s260, 38
          %s263 = smul.u32 128, %s262
        $region44: #{tpu_custom_call.1} parent=35 // pred_fallthru
          _
      $region36: #{tpu_custom_call.1} parent=5 // pred_fallthru
        _
      %p264 = scmp.le.s32.totalorder 1, %s13
      %p265 = scmp.lt.s32.totalorder %s13, 3
      %p266 = pnand %p264, %p265
      %p267 = pneg %p266
      // Predicated region
      $region45: #{tpu_custom_call.1} parent=5 // pred_check
        _
      $region46: #{tpu_custom_call.1} parent=5 // pred_check_branch
        %269 = sbr.rel (%p266) target = $region48
      $region47: #{tpu_custom_call.1} parent=5 // pred_region
        %s270 = ssub.s32 %s13, 1
        %s271 = smul.u32 38, %s18
        %s272 = ssub.s32 75, %s271
        %p273 = scmp.lt.s32.totalorder %s272, 38
        %s274 = scalar_select %p273, %s272, 38
        %s275 = smul.u32 64, %s274
        %p276 = scmp.lt.s32.totalorder %s271, 74
        %s277 = scalar_select %p276, %s271, 74
        %s278 = smul.addr %s277, 4
        %s279 = scalar_lea.vmem %s0, %s278
        %p280 = pneg %p39
        %p281 = pneg %p36
        %s282 = smul.u32 38, %s18
        %s283 = ssub.s32 75, %s282
        %p284 = scmp.lt.s32.totalorder %s283, 38
        %s285 = scalar_select %p284, %s283, 38
        %s286 = smul.u32 128, %s285
        %p287 = scmp.lt.s32.totalorder %s282, 74
        %s288 = scalar_select %p287, %s282, 74
        %s289 = smul.addr %s288, 8
        %s290 = scalar_lea.vmem %s1, %s289
        %p291 = pneg %p65
        %p292 = pneg %p62
        %p293 = pneg %p86
        %p294 = pneg %p83
        %p295 = pneg %p107
        %p296 = pneg %p104
        %p297 = pneg %p128
        %p298 = pneg %p125
        %p299 = pneg %p149
        %p300 = pneg %p146
        %p301 = pneg %p170
        %p302 = pneg %p167
        %p303 = pneg %p196
        %p304 = pneg %p193
        %s305 = sand.u32 %s183, 1
        %s306 = sand.u32 %s183, 1
        %s307 = smul.addr %s306, 304
        %s308 = scalar_lea.vmem [#allocation2], %s307
        %s309 = smul.u32 38, %s18
        %s310 = ssub.s32 75, %s309
        %p311 = scmp.lt.s32.totalorder %s310, 38
        %s312 = scalar_select %p311, %s310, 38
        %s313 = smul.u32 64, %s312
        %p314 = scmp.lt.s32.totalorder %s309, 74
        %s315 = scalar_select %p314, %s309, 74
        %s316 = smul.addr %s315, 4
        %s317 = scalar_lea.vmem %s0, %s316
        %s318 = smul.u32 38, %s18
        %s319 = ssub.s32 75, %s318
        %p320 = scmp.lt.s32.totalorder %s319, 38
        %s321 = scalar_select %p320, %s319, 38
        %s322 = smul.u32 64, %s321
        %s323 = smul.u32 38, %s18
        %s324 = ssub.s32 75, %s323
        %p325 = scmp.lt.s32.totalorder %s324, 38
        %s326 = scalar_select %p325, %s324, 38
        %s327 = smul.u32 128, %s326
        %p328 = scmp.lt.s32.totalorder %s323, 74
        %s329 = scalar_select %p328, %s323, 74
        %s330 = smul.addr %s329, 8
        %s331 = scalar_lea.vmem %s1, %s330
        %s332 = smul.u32 38, %s18
        %s333 = ssub.s32 75, %s332
        %p334 = scmp.lt.s32.totalorder %s333, 38
        %s335 = scalar_select %p334, %s333, 38
        %s336 = smul.u32 128, %s335
        %s337 = smul.u32 38, %s18
        %s338 = ssub.s32 75, %s337
        %p339 = scmp.lt.s32.totalorder %s338, 38
        %s340 = scalar_select %p339, %s338, 38
        %s341 = smul.u32 128, %s340
        %v343 = vld [vmem:[%s317] sm:$0xf]
        %v344 = vld [vmem:[%s317 + $0x4] sm:$0xf]
        %v345 = vld [vmem:[%s317 + $0x8] sm:$0xf]
        %v346 = vld [vmem:[%s317 + $0xc] sm:$0xf]
        %v347 = vld [vmem:[%s317 + $0x10] sm:$0xf]
        %v348 = vld [vmem:[%s317 + $0x14] sm:$0xf]
        %v349 = vld [vmem:[%s317 + $0x18] sm:$0xf]
        %v350 = vld [vmem:[%s317 + $0x1c] sm:$0xf]
        %v351 = vld [vmem:[%s317 + $0x20] sm:$0xf]
        %v352 = vld [vmem:[%s317 + $0x24] sm:$0xf]
        %v353 = vld [vmem:[%s317 + $0x28] sm:$0xf]
        %v354 = vld [vmem:[%s317 + $0x2c] sm:$0xf]
        %v355 = vld [vmem:[%s317 + $0x30] sm:$0xf]
        %v356 = vld [vmem:[%s317 + $0x34] sm:$0xf]
        %v357 = vld [vmem:[%s317 + $0x38] sm:$0xf]
        %v358 = vld [vmem:[%s317 + $0x3c] sm:$0xf]
        %v359 = vld [vmem:[%s317 + $0x40] sm:$0xf]
        %v360 = vld [vmem:[%s317 + $0x44] sm:$0xf]
        %v361 = vld [vmem:[%s317 + $0x48] sm:$0xf]
        %v362 = vld [vmem:[%s317 + $0x4c] sm:$0xf]
        %v363 = vld [vmem:[%s317 + $0x50] sm:$0xf]
        %v364 = vld [vmem:[%s317 + $0x54] sm:$0xf]
        %v365 = vld [vmem:[%s317 + $0x58] sm:$0xf]
        %v366 = vld [vmem:[%s317 + $0x5c] sm:$0xf]
        %v367 = vld [vmem:[%s317 + $0x60] sm:$0xf]
        %v368 = vld [vmem:[%s317 + $0x64] sm:$0xf]
        %v369 = vld [vmem:[%s317 + $0x68] sm:$0xf]
        %v370 = vld [vmem:[%s317 + $0x6c] sm:$0xf]
        %v371 = vld [vmem:[%s317 + $0x70] sm:$0xf]
        %v372 = vld [vmem:[%s317 + $0x74] sm:$0xf]
        %v373 = vld [vmem:[%s317 + $0x78] sm:$0xf]
        %v374 = vld [vmem:[%s317 + $0x7c] sm:$0xf]
        %v375 = vld [vmem:[%s317 + $0x80] sm:$0xf]
        %v376 = vld [vmem:[%s317 + $0x84] sm:$0xf]
        %v377 = vld [vmem:[%s317 + $0x88] sm:$0xf]
        %v378 = vld [vmem:[%s317 + $0x8c] sm:$0xf]
        %v379 = vld [vmem:[%s317 + $0x90] sm:$0xf]
        %v380 = vld [vmem:[%s317 + $0x94] sm:$0xf]
        %v381 = vld [vmem:[%s2] sm:$0xf]
        %v382 = vld [vmem:[%s2 + $0x4] sm:$0xf]
        %v383 = vld [vmem:[%s2 + $0x8] sm:$0xf]
        %v384 = vld [vmem:[%s2 + $0xc] sm:$0xf]
        %v385 = vld [vmem:[%s2 + $0x10] sm:$0xf]
        %v386 = vld [vmem:[%s2 + $0x14] sm:$0xf]
        %v387 = vld [vmem:[%s2 + $0x18] sm:$0xf]
        %v388 = vld [vmem:[%s2 + $0x1c] sm:$0xf]
        %v389 = vld [vmem:[%s2 + $0x20] sm:$0xf]
        %v390 = vld [vmem:[%s2 + $0x24] sm:$0xf]
        %v391 = vld [vmem:[%s2 + $0x28] sm:$0xf]
        %v392 = vld [vmem:[%s2 + $0x2c] sm:$0xf]
        %v393 = vld [vmem:[%s2 + $0x30] sm:$0xf]
        %v394 = vld [vmem:[%s3] sm:$0x1]
        %v396 = vlaneseq
        %v397 = vshrl.u32 %v396, 7
        %v398 = vsub.s32 0, %v397
        %v399 = vrot.slane %v394, %v398
        %v439 = vunpack.c.l.b16 %v343
        %v440 = vunpack.c.l.b16 %v344
        %v441 = vunpack.c.l.b16 %v345
        %v442 = vunpack.c.l.b16 %v346
        %v443 = vunpack.c.l.b16 %v347
        %v444 = vunpack.c.l.b16 %v348
        %v445 = vunpack.c.l.b16 %v349
        %v446 = vunpack.c.l.b16 %v350
        %v447 = vunpack.c.l.b16 %v351
        %v448 = vunpack.c.l.b16 %v352
        %v449 = vunpack.c.l.b16 %v353
        %v450 = vunpack.c.l.b16 %v354
        %v451 = vunpack.c.l.b16 %v355
        %v452 = vunpack.c.l.b16 %v356
        %v453 = vunpack.c.l.b16 %v357
        %v454 = vunpack.c.l.b16 %v358
        %v455 = vunpack.c.l.b16 %v359
        %v456 = vunpack.c.l.b16 %v360
        %v457 = vunpack.c.l.b16 %v361
        %v458 = vunpack.c.l.b16 %v362
        %v459 = vunpack.c.l.b16 %v363
        %v460 = vunpack.c.l.b16 %v364
        %v461 = vunpack.c.l.b16 %v365
        %v462 = vunpack.c.l.b16 %v366
        %v463 = vunpack.c.l.b16 %v367
        %v464 = vunpack.c.l.b16 %v368
        %v465 = vunpack.c.l.b16 %v369
        %v466 = vunpack.c.l.b16 %v370
        %v467 = vunpack.c.l.b16 %v371
        %v468 = vunpack.c.l.b16 %v372
        %v469 = vunpack.c.l.b16 %v373
        %v470 = vunpack.c.l.b16 %v374
        %v471 = vunpack.c.l.b16 %v375
        %v472 = vunpack.c.l.b16 %v376
        %v473 = vunpack.c.l.b16 %v377
        %v474 = vunpack.c.l.b16 %v378
        %v475 = vunpack.c.l.b16 %v379
        %v476 = vunpack.c.l.b16 %v380
        %v477 = vpack.c.b16 %v440, %v439
        %v478 = vpack.c.b16 %v442, %v441
        %v479 = vpack.c.b16 %v444, %v443
        %v480 = vpack.c.b16 %v446, %v445
        %v481 = vpack.c.b16 %v448, %v447
        %v482 = vpack.c.b16 %v450, %v449
        %v483 = vpack.c.b16 %v452, %v451
        %v484 = vpack.c.b16 %v454, %v453
        %v485 = vpack.c.b16 %v456, %v455
        %v486 = vpack.c.b16 %v458, %v457
        %v487 = vpack.c.b16 %v460, %v459
        %v488 = vpack.c.b16 %v462, %v461
        %v489 = vpack.c.b16 %v464, %v463
        %v490 = vpack.c.b16 %v466, %v465
        %v491 = vpack.c.b16 %v468, %v467
        %v492 = vpack.c.b16 %v470, %v469
        %v493 = vpack.c.b16 %v472, %v471
        %v494 = vpack.c.b16 %v474, %v473
        %v495 = vpack.c.b16 %v476, %v475
        %v509 = vunpack.c.l.b16 %v381
        %v510 = vunpack.c.l.b16 %v382
        %v511 = vunpack.c.l.b16 %v383
        %v512 = vunpack.c.l.b16 %v384
        %v513 = vunpack.c.l.b16 %v385
        %v514 = vunpack.c.l.b16 %v386
        %v515 = vunpack.c.l.b16 %v387
        %v516 = vunpack.c.l.b16 %v388
        %v517 = vunpack.c.l.b16 %v389
        %v518 = vunpack.c.l.b16 %v390
        %v519 = vunpack.c.l.b16 %v391
        %v520 = vunpack.c.l.b16 %v392
        %v521 = vunpack.c.l.b16 %v393
        %v522 = vpack.c.b16 %v510, %v509
        %v523 = vpack.c.b16 %v512, %v511
        %v524 = vpack.c.b16 %v514, %v513
        %v525 = vpack.c.b16 %v516, %v515
        %v526 = vpack.c.b16 %v518, %v517
        %v527 = vpack.c.b16 %v520, %v519
        %v528 = vpack.c.b16 %v521, %v521
        %vm535 = vcmask 850944
        %v537 = vsel %vm535, %v477, 0
        %v540 = vsel %vm535, %v478, 0
        %v543 = vsel %vm535, %v479, 0
        %v546 = vsel %vm535, %v480, 0
        %v549 = vsel %vm535, %v481, 0
        %v552 = vsel %vm535, %v482, 0
        %v555 = vsel %vm535, %v483, 0
        %v558 = vsel %vm535, %v484, 0
        %v561 = vsel %vm535, %v485, 0
        %v564 = vsel %vm535, %v486, 0
        %v567 = vsel %vm535, %v487, 0
        %v570 = vsel %vm535, %v488, 0
        %v573 = vsel %vm535, %v489, 0
        %v576 = vsel %vm535, %v490, 0
        %v579 = vsel %vm535, %v491, 0
        %v582 = vsel %vm535, %v492, 0
        %v585 = vsel %vm535, %v493, 0
        %v588 = vsel %vm535, %v494, 0
        %v591 = vsel %vm535, %v495, 0
        %vm593 = vcmask 1043456
        %v595 = vsel %vm593, %v528, 0
        %597 = vmatprep.subr.bf16.mxu0 0
        %598 = vmatpush1.bf16.msra.mxu0 0
        %599 = vmatprep.subr.bf16.mxu0 0
        %600 = vmatpush1.bf16.msra.mxu0 %v595
        %601 = vmatprep.subr.bf16.mxu0 0
        %602 = vmatpush1.bf16.msra.mxu0 %v527
        %603 = vmatprep.subr.bf16.mxu0 0
        %604 = vmatpush1.bf16.msra.mxu0 %v526
        %605 = vmatprep.subr.bf16.mxu0 0
        %606 = vmatpush1.bf16.msra.mxu0 %v525
        %607 = vmatprep.subr.bf16.mxu0 0
        %608 = vmatpush1.bf16.msra.mxu0 %v524
        %609 = vmatprep.subr.bf16.mxu0 0
        %610 = vmatpush1.bf16.msra.mxu0 %v523
        %611 = vmatprep.subr.bf16.mxu0 0
        %612 = vmatpush1.bf16.msra.mxu0 %v522
        %613 = vmatprep.subr.bf16.mxu0 0
        %614 = vmatpush2.bf16.msra.mxu0 0
        %615 = vmatprep.subr.bf16.mxu0 0
        %616 = vmatpush2.bf16.msra.mxu0 0
        %617 = vmatprep.subr.bf16.mxu0 0
        %618 = vmatpush2.bf16.msra.mxu0 0
        %619 = vmatprep.subr.bf16.mxu0 0
        %620 = vmatpush2.bf16.msra.mxu0 0
        %621 = vmatprep.subr.bf16.mxu0 0
        %622 = vmatpush2.bf16.msra.mxu0 0
        %623 = vmatprep.subr.bf16.mxu0 0
        %624 = vmatpush2.bf16.msra.mxu0 0
        %625 = vmatprep.subr.bf16.mxu0 0
        %626 = vmatpush2.bf16.msra.mxu0 0
        %627 = vmatprep.subr.bf16.mxu0 0
        %628 = vmatpush2.bf16.msra.mxu0 0
        %629 = vmatprep.mubr.bf16.mxu0 0
        %630 = vmatmul.mubr.bf16.gmra.mxu0 %v537
        %v631 = vpop.f32.mrf.mxu0
        %v632 = vadd.f32 %v399, %v631
        %v633 = vpop.f32.mrf.mxu0
        %v634 = vpop.f32.mrf.mxu0
        %v635 = vadd.f32 %v399, %v634
        %v636 = vpop.f32.mrf.mxu0
        %637 = vmatprep.mubr.bf16.mxu0 0
        %638 = vmatmul.mubr.bf16.gmra.mxu0 %v540
        %v639 = vpop.f32.mrf.mxu0
        %v640 = vadd.f32 %v399, %v639
        %v641 = vpop.f32.mrf.mxu0
        %v642 = vpop.f32.mrf.mxu0
        %v643 = vadd.f32 %v399, %v642
        %v644 = vpop.f32.mrf.mxu0
        %645 = vmatprep.mubr.bf16.mxu0 0
        %646 = vmatmul.mubr.bf16.gmra.mxu0 %v543
        %v647 = vpop.f32.mrf.mxu0
        %v648 = vadd.f32 %v399, %v647
        %v649 = vpop.f32.mrf.mxu0
        %v650 = vpop.f32.mrf.mxu0
        %v651 = vadd.f32 %v399, %v650
        %v652 = vpop.f32.mrf.mxu0
        %653 = vmatprep.mubr.bf16.mxu0 0
        %654 = vmatmul.mubr.bf16.gmra.mxu0 %v546
        %v655 = vpop.f32.mrf.mxu0
        %v656 = vadd.f32 %v399, %v655
        %v657 = vpop.f32.mrf.mxu0
        %v658 = vpop.f32.mrf.mxu0
        %v659 = vadd.f32 %v399, %v658
        %v660 = vpop.f32.mrf.mxu0
        %661 = vmatprep.mubr.bf16.mxu0 0
        %662 = vmatmul.mubr.bf16.gmra.mxu0 %v549
        %v663 = vpop.f32.mrf.mxu0
        %v664 = vadd.f32 %v399, %v663
        %v665 = vpop.f32.mrf.mxu0
        %v666 = vpop.f32.mrf.mxu0
        %v667 = vadd.f32 %v399, %v666
        %v668 = vpop.f32.mrf.mxu0
        %669 = vmatprep.mubr.bf16.mxu0 0
        %670 = vmatmul.mubr.bf16.gmra.mxu0 %v552
        %v671 = vpop.f32.mrf.mxu0
        %v672 = vadd.f32 %v399, %v671
        %v673 = vpop.f32.mrf.mxu0
        %v674 = vpop.f32.mrf.mxu0
        %v675 = vadd.f32 %v399, %v674
        %v676 = vpop.f32.mrf.mxu0
        %677 = vmatprep.mubr.bf16.mxu0 0
        %678 = vmatmul.mubr.bf16.gmra.mxu0 %v555
        %v679 = vpop.f32.mrf.mxu0
        %v680 = vadd.f32 %v399, %v679
        %v681 = vpop.f32.mrf.mxu0
        %v682 = vpop.f32.mrf.mxu0
        %v683 = vadd.f32 %v399, %v682
        %v684 = vpop.f32.mrf.mxu0
        %685 = vmatprep.mubr.bf16.mxu0 0
        %686 = vmatmul.mubr.bf16.gmra.mxu0 %v558
        %v687 = vpop.f32.mrf.mxu0
        %v688 = vadd.f32 %v399, %v687
        %v689 = vpop.f32.mrf.mxu0
        %v690 = vpop.f32.mrf.mxu0
        %v691 = vadd.f32 %v399, %v690
        %v692 = vpop.f32.mrf.mxu0
        %693 = vmatprep.mubr.bf16.mxu0 0
        %694 = vmatmul.mubr.bf16.gmra.mxu0 %v561
        %v695 = vpop.f32.mrf.mxu0
        %v696 = vadd.f32 %v399, %v695
        %v697 = vpop.f32.mrf.mxu0
        %v698 = vpop.f32.mrf.mxu0
        %v699 = vadd.f32 %v399, %v698
        %v700 = vpop.f32.mrf.mxu0
        %701 = vmatprep.mubr.bf16.mxu0 0
        %702 = vmatmul.mubr.bf16.gmra.mxu0 %v564
        %v703 = vpop.f32.mrf.mxu0
        %v704 = vadd.f32 %v399, %v703
        %v705 = vpop.f32.mrf.mxu0
        %v706 = vpop.f32.mrf.mxu0
        %v707 = vadd.f32 %v399, %v706
        %v708 = vpop.f32.mrf.mxu0
        %709 = vmatprep.mubr.bf16.mxu0 0
        %710 = vmatmul.mubr.bf16.gmra.mxu0 %v567
        %v711 = vpop.f32.mrf.mxu0
        %v712 = vadd.f32 %v399, %v711
        %v713 = vpop.f32.mrf.mxu0
        %v714 = vpop.f32.mrf.mxu0
        %v715 = vadd.f32 %v399, %v714
        %v716 = vpop.f32.mrf.mxu0
        %717 = vmatprep.mubr.bf16.mxu0 0
        %718 = vmatmul.mubr.bf16.gmra.mxu0 %v570
        %v719 = vpop.f32.mrf.mxu0
        %v720 = vadd.f32 %v399, %v719
        %v721 = vpop.f32.mrf.mxu0
        %v722 = vpop.f32.mrf.mxu0
        %v723 = vadd.f32 %v399, %v722
        %v724 = vpop.f32.mrf.mxu0
        %725 = vmatprep.mubr.bf16.mxu0 0
        %726 = vmatmul.mubr.bf16.gmra.mxu0 %v573
        %v727 = vpop.f32.mrf.mxu0
        %v728 = vadd.f32 %v399, %v727
        %v729 = vpop.f32.mrf.mxu0
        %v730 = vpop.f32.mrf.mxu0
        %v731 = vadd.f32 %v399, %v730
        %v732 = vpop.f32.mrf.mxu0
        %733 = vmatprep.mubr.bf16.mxu0 0
        %734 = vmatmul.mubr.bf16.gmra.mxu0 %v576
        %v735 = vpop.f32.mrf.mxu0
        %v736 = vadd.f32 %v399, %v735
        %v737 = vpop.f32.mrf.mxu0
        %v738 = vpop.f32.mrf.mxu0
        %v739 = vadd.f32 %v399, %v738
        %v740 = vpop.f32.mrf.mxu0
        %741 = vmatprep.mubr.bf16.mxu0 0
        %742 = vmatmul.mubr.bf16.gmra.mxu0 %v579
        %v743 = vpop.f32.mrf.mxu0
        %v744 = vadd.f32 %v399, %v743
        %v745 = vpop.f32.mrf.mxu0
        %v746 = vpop.f32.mrf.mxu0
        %v747 = vadd.f32 %v399, %v746
        %v748 = vpop.f32.mrf.mxu0
        %749 = vmatprep.mubr.bf16.mxu0 0
        %750 = vmatmul.mubr.bf16.gmra.mxu0 %v582
        %v751 = vpop.f32.mrf.mxu0
        %v752 = vadd.f32 %v399, %v751
        %v753 = vpop.f32.mrf.mxu0
        %v754 = vpop.f32.mrf.mxu0
        %v755 = vadd.f32 %v399, %v754
        %v756 = vpop.f32.mrf.mxu0
        %757 = vmatprep.mubr.bf16.mxu0 0
        %758 = vmatmul.mubr.bf16.gmra.mxu0 %v585
        %v759 = vpop.f32.mrf.mxu0
        %v760 = vadd.f32 %v399, %v759
        %v761 = vpop.f32.mrf.mxu0
        %v762 = vpop.f32.mrf.mxu0
        %v763 = vadd.f32 %v399, %v762
        %v764 = vpop.f32.mrf.mxu0
        %765 = vmatprep.mubr.bf16.mxu0 0
        %766 = vmatmul.mubr.bf16.gmra.mxu0 %v588
        %v767 = vpop.f32.mrf.mxu0
        %v768 = vadd.f32 %v399, %v767
        %v769 = vpop.f32.mrf.mxu0
        %v770 = vpop.f32.mrf.mxu0
        %v771 = vadd.f32 %v399, %v770
        %v772 = vpop.f32.mrf.mxu0
        %773 = vmatprep.mubr.bf16.mxu0 0
        %774 = vmatmul.mubr.bf16.gmra.mxu0 %v591
        %v775 = vpop.f32.mrf.mxu0
        %v776 = vadd.f32 %v399, %v775
        %v777 = vpop.f32.mrf.mxu0
        %v778 = vpop.f32.mrf.mxu0
        %v779 = vadd.f32 %v399, %v778
        %v780 = vpop.f32.mrf.mxu0
        %781 = vdwg.mxu0
        %v782 = vmax.f32 %v632, 0.0
        %v783 = vmax.f32 %v635, 0.0
        %v784 = vmax.f32 %v640, 0.0
        %v785 = vmax.f32 %v643, 0.0
        %v786 = vmax.f32 %v648, 0.0
        %v787 = vmax.f32 %v651, 0.0
        %v788 = vmax.f32 %v656, 0.0
        %v789 = vmax.f32 %v659, 0.0
        %v790 = vmax.f32 %v664, 0.0
        %v791 = vmax.f32 %v667, 0.0
        %v792 = vmax.f32 %v672, 0.0
        %v793 = vmax.f32 %v675, 0.0
        %v794 = vmax.f32 %v680, 0.0
        %v795 = vmax.f32 %v683, 0.0
        %v796 = vmax.f32 %v688, 0.0
        %v797 = vmax.f32 %v691, 0.0
        %v798 = vmax.f32 %v696, 0.0
        %v799 = vmax.f32 %v699, 0.0
        %v800 = vmax.f32 %v704, 0.0
        %v801 = vmax.f32 %v707, 0.0
        %v802 = vmax.f32 %v712, 0.0
        %v803 = vmax.f32 %v715, 0.0
        %v804 = vmax.f32 %v720, 0.0
        %v805 = vmax.f32 %v723, 0.0
        %v806 = vmax.f32 %v728, 0.0
        %v807 = vmax.f32 %v731, 0.0
        %v808 = vmax.f32 %v736, 0.0
        %v809 = vmax.f32 %v739, 0.0
        %v810 = vmax.f32 %v744, 0.0
        %v811 = vmax.f32 %v747, 0.0
        %v812 = vmax.f32 %v752, 0.0
        %v813 = vmax.f32 %v755, 0.0
        %v814 = vmax.f32 %v760, 0.0
        %v815 = vmax.f32 %v763, 0.0
        %v816 = vmax.f32 %v768, 0.0
        %v817 = vmax.f32 %v771, 0.0
        %v818 = vmax.f32 %v776, 0.0
        %v819 = vmax.f32 %v779, 0.0
        %v820 = vpack.c.bf16 %v783, %v782
        %v821 = vpack.c.bf16 %v785, %v784
        %v822 = vpack.c.bf16 %v787, %v786
        %v823 = vpack.c.bf16 %v789, %v788
        %v824 = vpack.c.bf16 %v791, %v790
        %v825 = vpack.c.bf16 %v793, %v792
        %v826 = vpack.c.bf16 %v795, %v794
        %v827 = vpack.c.bf16 %v797, %v796
        %v828 = vpack.c.bf16 %v799, %v798
        %v829 = vpack.c.bf16 %v801, %v800
        %v830 = vpack.c.bf16 %v803, %v802
        %v831 = vpack.c.bf16 %v805, %v804
        %v832 = vpack.c.bf16 %v807, %v806
        %v833 = vpack.c.bf16 %v809, %v808
        %v834 = vpack.c.bf16 %v811, %v810
        %v835 = vpack.c.bf16 %v813, %v812
        %v836 = vpack.c.bf16 %v815, %v814
        %v837 = vpack.c.bf16 %v817, %v816
        %v838 = vpack.c.bf16 %v819, %v818
        %v839 = vld [vmem:[%s4] sm:$0xf]
        %v840 = vld [vmem:[%s4 + $0x4] sm:$0xf]
        %v841 = vld [vmem:[%s4 + $0x8] sm:$0xf]
        %v842 = vld [vmem:[%s4 + $0xc] sm:$0xf]
        %v843 = vld [vmem:[%s4 + $0x10] sm:$0xf]
        %v844 = vld [vmem:[%s4 + $0x14] sm:$0xf]
        %v845 = vld [vmem:[%s4 + $0x18] sm:$0xf]
        %v846 = vld [vmem:[%s4 + $0x1c] sm:$0xf]
        %v847 = vld [vmem:[%s4 + $0x20] sm:$0xf]
        %v848 = vld [vmem:[%s4 + $0x24] sm:$0xf]
        %v849 = vld [vmem:[%s4 + $0x28] sm:$0xf]
        %v850 = vld [vmem:[%s4 + $0x2c] sm:$0xf]
        %v851 = vld [vmem:[%s4 + $0x30] sm:$0xf]
        %v852 = vld [vmem:[%s4 + $0x34] sm:$0xf]
        %v853 = vld [vmem:[%s4 + $0x38] sm:$0xf]
        %v854 = vld [vmem:[%s4 + $0x3c] sm:$0xf]
        %v855 = vld [vmem:[%s5] sm:$0x1]
        %v857 = vlaneseq
        %v858 = vshrl.u32 %v857, 7
        %v859 = vsub.s32 0, %v858
        %v860 = vrot.slane %v855, %v859
        %v878 = vunpack.c.l.b16 %v839
        %v879 = vunpack.c.l.b16 %v840
        %v880 = vunpack.c.l.b16 %v841
        %v881 = vunpack.c.l.b16 %v842
        %v882 = vunpack.c.l.b16 %v843
        %v883 = vunpack.c.l.b16 %v844
        %v884 = vunpack.c.l.b16 %v845
        %v885 = vunpack.c.l.b16 %v846
        %v886 = vunpack.c.l.b16 %v847
        %v887 = vunpack.c.l.b16 %v848
        %v888 = vunpack.c.l.b16 %v849
        %v889 = vunpack.c.l.b16 %v850
        %v890 = vunpack.c.l.b16 %v851
        %v891 = vunpack.c.l.b16 %v852
        %v892 = vunpack.c.l.b16 %v853
        %v893 = vunpack.c.l.b16 %v854
        %v894 = vpack.c.b16 %v879, %v878
        %v895 = vpack.c.b16 %v881, %v880
        %v896 = vpack.c.b16 %v883, %v882
        %v897 = vpack.c.b16 %v885, %v884
        %v898 = vpack.c.b16 %v887, %v886
        %v899 = vpack.c.b16 %v889, %v888
        %v900 = vpack.c.b16 %v891, %v890
        %v901 = vpack.c.b16 %v893, %v892
        %910 = vmatprep.subr.bf16.mxu0 0
        %911 = vmatpush1.bf16.msra.mxu0 %v901
        %912 = vmatprep.subr.bf16.mxu0 0
        %913 = vmatpush1.bf16.msra.mxu0 %v900
        %914 = vmatprep.subr.bf16.mxu0 0
        %915 = vmatpush1.bf16.msra.mxu0 %v899
        %916 = vmatprep.subr.bf16.mxu0 0
        %917 = vmatpush1.bf16.msra.mxu0 %v898
        %918 = vmatprep.subr.bf16.mxu0 0
        %919 = vmatpush1.bf16.msra.mxu0 %v897
        %920 = vmatprep.subr.bf16.mxu0 0
        %921 = vmatpush1.bf16.msra.mxu0 %v896
        %922 = vmatprep.subr.bf16.mxu0 0
        %923 = vmatpush1.bf16.msra.mxu0 %v895
        %924 = vmatprep.subr.bf16.mxu0 0
        %925 = vmatpush1.bf16.msra.mxu0 %v894
        %926 = vmatprep.subr.bf16.mxu0 0
        %927 = vmatpush2.bf16.msra.mxu0 0
        %928 = vmatprep.subr.bf16.mxu0 0
        %929 = vmatpush2.bf16.msra.mxu0 0
        %930 = vmatprep.subr.bf16.mxu0 0
        %931 = vmatpush2.bf16.msra.mxu0 0
        %932 = vmatprep.subr.bf16.mxu0 0
        %933 = vmatpush2.bf16.msra.mxu0 0
        %934 = vmatprep.subr.bf16.mxu0 0
        %935 = vmatpush2.bf16.msra.mxu0 0
        %936 = vmatprep.subr.bf16.mxu0 0
        %937 = vmatpush2.bf16.msra.mxu0 0
        %938 = vmatprep.subr.bf16.mxu0 0
        %939 = vmatpush2.bf16.msra.mxu0 0
        %940 = vmatprep.subr.bf16.mxu0 0
        %941 = vmatpush2.bf16.msra.mxu0 0
        %942 = vmatprep.mubr.bf16.mxu0 0
        %943 = vmatmul.mubr.bf16.gmra.mxu0 %v820
        %v944 = vpop.f32.mrf.mxu0
        %v945 = vadd.f32 %v860, %v944
        %v946 = vpop.f32.mrf.mxu0
        %v947 = vpop.f32.mrf.mxu0
        %v948 = vadd.f32 %v860, %v947
        %v949 = vpop.f32.mrf.mxu0
        %950 = vmatprep.mubr.bf16.mxu0 0
        %951 = vmatmul.mubr.bf16.gmra.mxu0 %v821
        %v952 = vpop.f32.mrf.mxu0
        %v953 = vadd.f32 %v860, %v952
        %v954 = vpop.f32.mrf.mxu0
        %v955 = vpop.f32.mrf.mxu0
        %v956 = vadd.f32 %v860, %v955
        %v957 = vpop.f32.mrf.mxu0
        %958 = vmatprep.mubr.bf16.mxu0 0
        %959 = vmatmul.mubr.bf16.gmra.mxu0 %v822
        %v960 = vpop.f32.mrf.mxu0
        %v961 = vadd.f32 %v860, %v960
        %v962 = vpop.f32.mrf.mxu0
        %v963 = vpop.f32.mrf.mxu0
        %v964 = vadd.f32 %v860, %v963
        %v965 = vpop.f32.mrf.mxu0
        %966 = vmatprep.mubr.bf16.mxu0 0
        %967 = vmatmul.mubr.bf16.gmra.mxu0 %v823
        %v968 = vpop.f32.mrf.mxu0
        %v969 = vadd.f32 %v860, %v968
        %v970 = vpop.f32.mrf.mxu0
        %v971 = vpop.f32.mrf.mxu0
        %v972 = vadd.f32 %v860, %v971
        %v973 = vpop.f32.mrf.mxu0
        %974 = vmatprep.mubr.bf16.mxu0 0
        %975 = vmatmul.mubr.bf16.gmra.mxu0 %v824
        %v976 = vpop.f32.mrf.mxu0
        %v977 = vadd.f32 %v860, %v976
        %v978 = vpop.f32.mrf.mxu0
        %v979 = vpop.f32.mrf.mxu0
        %v980 = vadd.f32 %v860, %v979
        %v981 = vpop.f32.mrf.mxu0
        %982 = vmatprep.mubr.bf16.mxu0 0
        %983 = vmatmul.mubr.bf16.gmra.mxu0 %v825
        %v984 = vpop.f32.mrf.mxu0
        %v985 = vadd.f32 %v860, %v984
        %v986 = vpop.f32.mrf.mxu0
        %v987 = vpop.f32.mrf.mxu0
        %v988 = vadd.f32 %v860, %v987
        %v989 = vpop.f32.mrf.mxu0
        %990 = vmatprep.mubr.bf16.mxu0 0
        %991 = vmatmul.mubr.bf16.gmra.mxu0 %v826
        %v992 = vpop.f32.mrf.mxu0
        %v993 = vadd.f32 %v860, %v992
        %v994 = vpop.f32.mrf.mxu0
        %v995 = vpop.f32.mrf.mxu0
        %v996 = vadd.f32 %v860, %v995
        %v997 = vpop.f32.mrf.mxu0
        %998 = vmatprep.mubr.bf16.mxu0 0
        %999 = vmatmul.mubr.bf16.gmra.mxu0 %v827
        %v1000 = vpop.f32.mrf.mxu0
        %v1001 = vadd.f32 %v860, %v1000
        %v1002 = vpop.f32.mrf.mxu0
        %v1003 = vpop.f32.mrf.mxu0
        %v1004 = vadd.f32 %v860, %v1003
        %v1005 = vpop.f32.mrf.mxu0
        %1006 = vmatprep.mubr.bf16.mxu0 0
        %1007 = vmatmul.mubr.bf16.gmra.mxu0 %v828
        %v1008 = vpop.f32.mrf.mxu0
        %v1009 = vadd.f32 %v860, %v1008
        %v1010 = vpop.f32.mrf.mxu0
        %v1011 = vpop.f32.mrf.mxu0
        %v1012 = vadd.f32 %v860, %v1011
        %v1013 = vpop.f32.mrf.mxu0
        %1014 = vmatprep.mubr.bf16.mxu0 0
        %1015 = vmatmul.mubr.bf16.gmra.mxu0 %v829
        %v1016 = vpop.f32.mrf.mxu0
        %v1017 = vadd.f32 %v860, %v1016
        %v1018 = vpop.f32.mrf.mxu0
        %v1019 = vpop.f32.mrf.mxu0
        %v1020 = vadd.f32 %v860, %v1019
        %v1021 = vpop.f32.mrf.mxu0
        %1022 = vmatprep.mubr.bf16.mxu0 0
        %1023 = vmatmul.mubr.bf16.gmra.mxu0 %v830
        %v1024 = vpop.f32.mrf.mxu0
        %v1025 = vadd.f32 %v860, %v1024
        %v1026 = vpop.f32.mrf.mxu0
        %v1027 = vpop.f32.mrf.mxu0
        %v1028 = vadd.f32 %v860, %v1027
        %v1029 = vpop.f32.mrf.mxu0
        %1030 = vmatprep.mubr.bf16.mxu0 0
        %1031 = vmatmul.mubr.bf16.gmra.mxu0 %v831
        %v1032 = vpop.f32.mrf.mxu0
        %v1033 = vadd.f32 %v860, %v1032
        %v1034 = vpop.f32.mrf.mxu0
        %v1035 = vpop.f32.mrf.mxu0
        %v1036 = vadd.f32 %v860, %v1035
        %v1037 = vpop.f32.mrf.mxu0
        %1038 = vmatprep.mubr.bf16.mxu0 0
        %1039 = vmatmul.mubr.bf16.gmra.mxu0 %v832
        %v1040 = vpop.f32.mrf.mxu0
        %v1041 = vadd.f32 %v860, %v1040
        %v1042 = vpop.f32.mrf.mxu0
        %v1043 = vpop.f32.mrf.mxu0
        %v1044 = vadd.f32 %v860, %v1043
        %v1045 = vpop.f32.mrf.mxu0
        %1046 = vmatprep.mubr.bf16.mxu0 0
        %1047 = vmatmul.mubr.bf16.gmra.mxu0 %v833
        %v1048 = vpop.f32.mrf.mxu0
        %v1049 = vadd.f32 %v860, %v1048
        %v1050 = vpop.f32.mrf.mxu0
        %v1051 = vpop.f32.mrf.mxu0
        %v1052 = vadd.f32 %v860, %v1051
        %v1053 = vpop.f32.mrf.mxu0
        %1054 = vmatprep.mubr.bf16.mxu0 0
        %1055 = vmatmul.mubr.bf16.gmra.mxu0 %v834
        %v1056 = vpop.f32.mrf.mxu0
        %v1057 = vadd.f32 %v860, %v1056
        %v1058 = vpop.f32.mrf.mxu0
        %v1059 = vpop.f32.mrf.mxu0
        %v1060 = vadd.f32 %v860, %v1059
        %v1061 = vpop.f32.mrf.mxu0
        %1062 = vmatprep.mubr.bf16.mxu0 0
        %1063 = vmatmul.mubr.bf16.gmra.mxu0 %v835
        %v1064 = vpop.f32.mrf.mxu0
        %v1065 = vadd.f32 %v860, %v1064
        %v1066 = vpop.f32.mrf.mxu0
        %v1067 = vpop.f32.mrf.mxu0
        %v1068 = vadd.f32 %v860, %v1067
        %v1069 = vpop.f32.mrf.mxu0
        %1070 = vmatprep.mubr.bf16.mxu0 0
        %1071 = vmatmul.mubr.bf16.gmra.mxu0 %v836
        %v1072 = vpop.f32.mrf.mxu0
        %v1073 = vadd.f32 %v860, %v1072
        %v1074 = vpop.f32.mrf.mxu0
        %v1075 = vpop.f32.mrf.mxu0
        %v1076 = vadd.f32 %v860, %v1075
        %v1077 = vpop.f32.mrf.mxu0
        %1078 = vmatprep.mubr.bf16.mxu0 0
        %1079 = vmatmul.mubr.bf16.gmra.mxu0 %v837
        %v1080 = vpop.f32.mrf.mxu0
        %v1081 = vadd.f32 %v860, %v1080
        %v1082 = vpop.f32.mrf.mxu0
        %v1083 = vpop.f32.mrf.mxu0
        %v1084 = vadd.f32 %v860, %v1083
        %v1085 = vpop.f32.mrf.mxu0
        %1086 = vmatprep.mubr.bf16.mxu0 0
        %1087 = vmatmul.mubr.bf16.gmra.mxu0 %v838
        %v1088 = vpop.f32.mrf.mxu0
        %v1089 = vadd.f32 %v860, %v1088
        %v1090 = vpop.f32.mrf.mxu0
        %v1091 = vpop.f32.mrf.mxu0
        %v1092 = vadd.f32 %v860, %v1091
        %v1093 = vpop.f32.mrf.mxu0
        %1094 = vdwg.mxu0
        %v1095 = vmax.f32 %v945, 0.0
        %v1096 = vmax.f32 %v948, 0.0
        %v1097 = vmax.f32 %v953, 0.0
        %v1098 = vmax.f32 %v956, 0.0
        %v1099 = vmax.f32 %v961, 0.0
        %v1100 = vmax.f32 %v964, 0.0
        %v1101 = vmax.f32 %v969, 0.0
        %v1102 = vmax.f32 %v972, 0.0
        %v1103 = vmax.f32 %v977, 0.0
        %v1104 = vmax.f32 %v980, 0.0
        %v1105 = vmax.f32 %v985, 0.0
        %v1106 = vmax.f32 %v988, 0.0
        %v1107 = vmax.f32 %v993, 0.0
        %v1108 = vmax.f32 %v996, 0.0
        %v1109 = vmax.f32 %v1001, 0.0
        %v1110 = vmax.f32 %v1004, 0.0
        %v1111 = vmax.f32 %v1009, 0.0
        %v1112 = vmax.f32 %v1012, 0.0
        %v1113 = vmax.f32 %v1017, 0.0
        %v1114 = vmax.f32 %v1020, 0.0
        %v1115 = vmax.f32 %v1025, 0.0
        %v1116 = vmax.f32 %v1028, 0.0
        %v1117 = vmax.f32 %v1033, 0.0
        %v1118 = vmax.f32 %v1036, 0.0
        %v1119 = vmax.f32 %v1041, 0.0
        %v1120 = vmax.f32 %v1044, 0.0
        %v1121 = vmax.f32 %v1049, 0.0
        %v1122 = vmax.f32 %v1052, 0.0
        %v1123 = vmax.f32 %v1057, 0.0
        %v1124 = vmax.f32 %v1060, 0.0
        %v1125 = vmax.f32 %v1065, 0.0
        %v1126 = vmax.f32 %v1068, 0.0
        %v1127 = vmax.f32 %v1073, 0.0
        %v1128 = vmax.f32 %v1076, 0.0
        %v1129 = vmax.f32 %v1081, 0.0
        %v1130 = vmax.f32 %v1084, 0.0
        %v1131 = vmax.f32 %v1089, 0.0
        %v1132 = vmax.f32 %v1092, 0.0
        %v1133 = vld [vmem:[%s6] sm:$0x7]
        %v1134 = vlaneseq
        %v1135 = vshrl.u32 %v1134, 7
        %v1136 = vsub.s32 0, %v1135
        %v1137 = vrot.slane %v1133, %v1136
        %v1138 = vmul.f32 %v1095, %v1137
        %v1139 = vmul.f32 %v1096, %v1137
        %v1140 = vmul.f32 %v1097, %v1137
        %v1141 = vmul.f32 %v1098, %v1137
        %v1142 = vmul.f32 %v1099, %v1137
        %v1143 = vmul.f32 %v1100, %v1137
        %v1144 = vmul.f32 %v1101, %v1137
        %v1145 = vmul.f32 %v1102, %v1137
        %v1146 = vmul.f32 %v1103, %v1137
        %v1147 = vmul.f32 %v1104, %v1137
        %v1148 = vmul.f32 %v1105, %v1137
        %v1149 = vmul.f32 %v1106, %v1137
        %v1150 = vmul.f32 %v1107, %v1137
        %v1151 = vmul.f32 %v1108, %v1137
        %v1152 = vmul.f32 %v1109, %v1137
        %v1153 = vmul.f32 %v1110, %v1137
        %v1154 = vmul.f32 %v1111, %v1137
        %v1155 = vmul.f32 %v1112, %v1137
        %v1156 = vmul.f32 %v1113, %v1137
        %v1157 = vmul.f32 %v1114, %v1137
        %v1158 = vmul.f32 %v1115, %v1137
        %v1159 = vmul.f32 %v1116, %v1137
        %v1160 = vmul.f32 %v1117, %v1137
        %v1161 = vmul.f32 %v1118, %v1137
        %v1162 = vmul.f32 %v1119, %v1137
        %v1163 = vmul.f32 %v1120, %v1137
        %v1164 = vmul.f32 %v1121, %v1137
        %v1165 = vmul.f32 %v1122, %v1137
        %v1166 = vmul.f32 %v1123, %v1137
        %v1167 = vmul.f32 %v1124, %v1137
        %v1168 = vmul.f32 %v1125, %v1137
        %v1169 = vmul.f32 %v1126, %v1137
        %v1170 = vmul.f32 %v1127, %v1137
        %v1171 = vmul.f32 %v1128, %v1137
        %v1172 = vmul.f32 %v1129, %v1137
        %v1173 = vmul.f32 %v1130, %v1137
        %v1174 = vmul.f32 %v1131, %v1137
        %v1175 = vmul.f32 %v1132, %v1137
        %1176 = vadd.xlane.f32.xlu0 %v1138
        %v1177 = vpop.xlane.xlu0 %1176
        %1178 = vadd.xlane.f32.xlu0 %v1139
        %v1179 = vpop.xlane.xlu0 %1178
        %1180 = vadd.xlane.f32.xlu0 %v1140
        %v1181 = vpop.xlane.xlu0 %1180
        %1182 = vadd.xlane.f32.xlu0 %v1141
        %v1183 = vpop.xlane.xlu0 %1182
        %1184 = vadd.xlane.f32.xlu0 %v1142
        %v1185 = vpop.xlane.xlu0 %1184
        %1186 = vadd.xlane.f32.xlu0 %v1143
        %v1187 = vpop.xlane.xlu0 %1186
        %1188 = vadd.xlane.f32.xlu0 %v1144
        %v1189 = vpop.xlane.xlu0 %1188
        %1190 = vadd.xlane.f32.xlu0 %v1145
        %v1191 = vpop.xlane.xlu0 %1190
        %1192 = vadd.xlane.f32.xlu0 %v1146
        %v1193 = vpop.xlane.xlu0 %1192
        %1194 = vadd.xlane.f32.xlu0 %v1147
        %v1195 = vpop.xlane.xlu0 %1194
        %1196 = vadd.xlane.f32.xlu0 %v1148
        %v1197 = vpop.xlane.xlu0 %1196
        %1198 = vadd.xlane.f32.xlu0 %v1149
        %v1199 = vpop.xlane.xlu0 %1198
        %1200 = vadd.xlane.f32.xlu0 %v1150
        %v1201 = vpop.xlane.xlu0 %1200
        %1202 = vadd.xlane.f32.xlu0 %v1151
        %v1203 = vpop.xlane.xlu0 %1202
        %1204 = vadd.xlane.f32.xlu0 %v1152
        %v1205 = vpop.xlane.xlu0 %1204
        %1206 = vadd.xlane.f32.xlu0 %v1153
        %v1207 = vpop.xlane.xlu0 %1206
        %1208 = vadd.xlane.f32.xlu0 %v1154
        %v1209 = vpop.xlane.xlu0 %1208
        %1210 = vadd.xlane.f32.xlu0 %v1155
        %v1211 = vpop.xlane.xlu0 %1210
        %1212 = vadd.xlane.f32.xlu0 %v1156
        %v1213 = vpop.xlane.xlu0 %1212
        %1214 = vadd.xlane.f32.xlu0 %v1157
        %v1215 = vpop.xlane.xlu0 %1214
        %1216 = vadd.xlane.f32.xlu0 %v1158
        %v1217 = vpop.xlane.xlu0 %1216
        %1218 = vadd.xlane.f32.xlu0 %v1159
        %v1219 = vpop.xlane.xlu0 %1218
        %1220 = vadd.xlane.f32.xlu0 %v1160
        %v1221 = vpop.xlane.xlu0 %1220
        %1222 = vadd.xlane.f32.xlu0 %v1161
        %v1223 = vpop.xlane.xlu0 %1222
        %1224 = vadd.xlane.f32.xlu0 %v1162
        %v1225 = vpop.xlane.xlu0 %1224
        %1226 = vadd.xlane.f32.xlu0 %v1163
        %v1227 = vpop.xlane.xlu0 %1226
        %1228 = vadd.xlane.f32.xlu0 %v1164
        %v1229 = vpop.xlane.xlu0 %1228
        %1230 = vadd.xlane.f32.xlu0 %v1165
        %v1231 = vpop.xlane.xlu0 %1230
        %1232 = vadd.xlane.f32.xlu0 %v1166
        %v1233 = vpop.xlane.xlu0 %1232
        %1234 = vadd.xlane.f32.xlu0 %v1167
        %v1235 = vpop.xlane.xlu0 %1234
        %1236 = vadd.xlane.f32.xlu0 %v1168
        %v1237 = vpop.xlane.xlu0 %1236
        %1238 = vadd.xlane.f32.xlu0 %v1169
        %v1239 = vpop.xlane.xlu0 %1238
        %1240 = vadd.xlane.f32.xlu0 %v1170
        %v1241 = vpop.xlane.xlu0 %1240
        %1242 = vadd.xlane.f32.xlu0 %v1171
        %v1243 = vpop.xlane.xlu0 %1242
        %1244 = vadd.xlane.f32.xlu0 %v1172
        %v1245 = vpop.xlane.xlu0 %1244
        %1246 = vadd.xlane.f32.xlu0 %v1173
        %v1247 = vpop.xlane.xlu0 %1246
        %1248 = vadd.xlane.f32.xlu0 %v1174
        %v1249 = vpop.xlane.xlu0 %1248
        %1250 = vadd.xlane.f32.xlu0 %v1175
        %v1251 = vpop.xlane.xlu0 %1250
        %v1252 = vlaneseq
        %v1253 = vshrl.u32 %v1252, 7
        %v1254 = vsub.s32 1, %v1253
        %v1255 = vrot.slane %v1133, %v1254
        %v1256 = vmul.f32 %v1095, %v1255
        %v1257 = vmul.f32 %v1096, %v1255
        %v1258 = vmul.f32 %v1097, %v1255
        %v1259 = vmul.f32 %v1098, %v1255
        %v1260 = vmul.f32 %v1099, %v1255
        %v1261 = vmul.f32 %v1100, %v1255
        %v1262 = vmul.f32 %v1101, %v1255
        %v1263 = vmul.f32 %v1102, %v1255
        %v1264 = vmul.f32 %v1103, %v1255
        %v1265 = vmul.f32 %v1104, %v1255
        %v1266 = vmul.f32 %v1105, %v1255
        %v1267 = vmul.f32 %v1106, %v1255
        %v1268 = vmul.f32 %v1107, %v1255
        %v1269 = vmul.f32 %v1108, %v1255
        %v1270 = vmul.f32 %v1109, %v1255
        %v1271 = vmul.f32 %v1110, %v1255
        %v1272 = vmul.f32 %v1111, %v1255
        %v1273 = vmul.f32 %v1112, %v1255
        %v1274 = vmul.f32 %v1113, %v1255
        %v1275 = vmul.f32 %v1114, %v1255
        %v1276 = vmul.f32 %v1115, %v1255
        %v1277 = vmul.f32 %v1116, %v1255
        %v1278 = vmul.f32 %v1117, %v1255
        %v1279 = vmul.f32 %v1118, %v1255
        %v1280 = vmul.f32 %v1119, %v1255
        %v1281 = vmul.f32 %v1120, %v1255
        %v1282 = vmul.f32 %v1121, %v1255
        %v1283 = vmul.f32 %v1122, %v1255
        %v1284 = vmul.f32 %v1123, %v1255
        %v1285 = vmul.f32 %v1124, %v1255
        %v1286 = vmul.f32 %v1125, %v1255
        %v1287 = vmul.f32 %v1126, %v1255
        %v1288 = vmul.f32 %v1127, %v1255
        %v1289 = vmul.f32 %v1128, %v1255
        %v1290 = vmul.f32 %v1129, %v1255
        %v1291 = vmul.f32 %v1130, %v1255
        %v1292 = vmul.f32 %v1131, %v1255
        %v1293 = vmul.f32 %v1132, %v1255
        %1294 = vadd.xlane.f32.xlu0 %v1256
        %v1295 = vpop.xlane.xlu0 %1294
        %1296 = vadd.xlane.f32.xlu0 %v1257
        %v1297 = vpop.xlane.xlu0 %1296
        %1298 = vadd.xlane.f32.xlu0 %v1258
        %v1299 = vpop.xlane.xlu0 %1298
        %1300 = vadd.xlane.f32.xlu0 %v1259
        %v1301 = vpop.xlane.xlu0 %1300
        %1302 = vadd.xlane.f32.xlu0 %v1260
        %v1303 = vpop.xlane.xlu0 %1302
        %1304 = vadd.xlane.f32.xlu0 %v1261
        %v1305 = vpop.xlane.xlu0 %1304
        %1306 = vadd.xlane.f32.xlu0 %v1262
        %v1307 = vpop.xlane.xlu0 %1306
        %1308 = vadd.xlane.f32.xlu0 %v1263
        %v1309 = vpop.xlane.xlu0 %1308
        %1310 = vadd.xlane.f32.xlu0 %v1264
        %v1311 = vpop.xlane.xlu0 %1310
        %1312 = vadd.xlane.f32.xlu0 %v1265
        %v1313 = vpop.xlane.xlu0 %1312
        %1314 = vadd.xlane.f32.xlu0 %v1266
        %v1315 = vpop.xlane.xlu0 %1314
        %1316 = vadd.xlane.f32.xlu0 %v1267
        %v1317 = vpop.xlane.xlu0 %1316
        %1318 = vadd.xlane.f32.xlu0 %v1268
        %v1319 = vpop.xlane.xlu0 %1318
        %1320 = vadd.xlane.f32.xlu0 %v1269
        %v1321 = vpop.xlane.xlu0 %1320
        %1322 = vadd.xlane.f32.xlu0 %v1270
        %v1323 = vpop.xlane.xlu0 %1322
        %1324 = vadd.xlane.f32.xlu0 %v1271
        %v1325 = vpop.xlane.xlu0 %1324
        %1326 = vadd.xlane.f32.xlu0 %v1272
        %v1327 = vpop.xlane.xlu0 %1326
        %1328 = vadd.xlane.f32.xlu0 %v1273
        %v1329 = vpop.xlane.xlu0 %1328
        %1330 = vadd.xlane.f32.xlu0 %v1274
        %v1331 = vpop.xlane.xlu0 %1330
        %1332 = vadd.xlane.f32.xlu0 %v1275
        %v1333 = vpop.xlane.xlu0 %1332
        %1334 = vadd.xlane.f32.xlu0 %v1276
        %v1335 = vpop.xlane.xlu0 %1334
        %1336 = vadd.xlane.f32.xlu0 %v1277
        %v1337 = vpop.xlane.xlu0 %1336
        %1338 = vadd.xlane.f32.xlu0 %v1278
        %v1339 = vpop.xlane.xlu0 %1338
        %1340 = vadd.xlane.f32.xlu0 %v1279
        %v1341 = vpop.xlane.xlu0 %1340
        %1342 = vadd.xlane.f32.xlu0 %v1280
        %v1343 = vpop.xlane.xlu0 %1342
        %1344 = vadd.xlane.f32.xlu0 %v1281
        %v1345 = vpop.xlane.xlu0 %1344
        %1346 = vadd.xlane.f32.xlu0 %v1282
        %v1347 = vpop.xlane.xlu0 %1346
        %1348 = vadd.xlane.f32.xlu0 %v1283
        %v1349 = vpop.xlane.xlu0 %1348
        %1350 = vadd.xlane.f32.xlu0 %v1284
        %v1351 = vpop.xlane.xlu0 %1350
        %1352 = vadd.xlane.f32.xlu0 %v1285
        %v1353 = vpop.xlane.xlu0 %1352
        %1354 = vadd.xlane.f32.xlu0 %v1286
        %v1355 = vpop.xlane.xlu0 %1354
        %1356 = vadd.xlane.f32.xlu0 %v1287
        %v1357 = vpop.xlane.xlu0 %1356
        %1358 = vadd.xlane.f32.xlu0 %v1288
        %v1359 = vpop.xlane.xlu0 %1358
        %1360 = vadd.xlane.f32.xlu0 %v1289
        %v1361 = vpop.xlane.xlu0 %1360
        %1362 = vadd.xlane.f32.xlu0 %v1290
        %v1363 = vpop.xlane.xlu0 %1362
        %1364 = vadd.xlane.f32.xlu0 %v1291
        %v1365 = vpop.xlane.xlu0 %1364
        %1366 = vadd.xlane.f32.xlu0 %v1292
        %v1367 = vpop.xlane.xlu0 %1366
        %1368 = vadd.xlane.f32.xlu0 %v1293
        %v1369 = vpop.xlane.xlu0 %1368
        %v1370 = vlaneseq
        %v1371 = vshrl.u32 %v1370, 7
        %v1372 = vsub.s32 2, %v1371
        %v1373 = vrot.slane %v1133, %v1372
        %v1374 = vmul.f32 %v1095, %v1373
        %v1375 = vmul.f32 %v1096, %v1373
        %v1376 = vmul.f32 %v1097, %v1373
        %v1377 = vmul.f32 %v1098, %v1373
        %v1378 = vmul.f32 %v1099, %v1373
        %v1379 = vmul.f32 %v1100, %v1373
        %v1380 = vmul.f32 %v1101, %v1373
        %v1381 = vmul.f32 %v1102, %v1373
        %v1382 = vmul.f32 %v1103, %v1373
        %v1383 = vmul.f32 %v1104, %v1373
        %v1384 = vmul.f32 %v1105, %v1373
        %v1385 = vmul.f32 %v1106, %v1373
        %v1386 = vmul.f32 %v1107, %v1373
        %v1387 = vmul.f32 %v1108, %v1373
        %v1388 = vmul.f32 %v1109, %v1373
        %v1389 = vmul.f32 %v1110, %v1373
        %v1390 = vmul.f32 %v1111, %v1373
        %v1391 = vmul.f32 %v1112, %v1373
        %v1392 = vmul.f32 %v1113, %v1373
        %v1393 = vmul.f32 %v1114, %v1373
        %v1394 = vmul.f32 %v1115, %v1373
        %v1395 = vmul.f32 %v1116, %v1373
        %v1396 = vmul.f32 %v1117, %v1373
        %v1397 = vmul.f32 %v1118, %v1373
        %v1398 = vmul.f32 %v1119, %v1373
        %v1399 = vmul.f32 %v1120, %v1373
        %v1400 = vmul.f32 %v1121, %v1373
        %v1401 = vmul.f32 %v1122, %v1373
        %v1402 = vmul.f32 %v1123, %v1373
        %v1403 = vmul.f32 %v1124, %v1373
        %v1404 = vmul.f32 %v1125, %v1373
        %v1405 = vmul.f32 %v1126, %v1373
        %v1406 = vmul.f32 %v1127, %v1373
        %v1407 = vmul.f32 %v1128, %v1373
        %v1408 = vmul.f32 %v1129, %v1373
        %v1409 = vmul.f32 %v1130, %v1373
        %v1410 = vmul.f32 %v1131, %v1373
        %v1411 = vmul.f32 %v1132, %v1373
        %1412 = vadd.xlane.f32.xlu0 %v1374
        %v1413 = vpop.xlane.xlu0 %1412
        %1414 = vadd.xlane.f32.xlu0 %v1375
        %v1415 = vpop.xlane.xlu0 %1414
        %1416 = vadd.xlane.f32.xlu0 %v1376
        %v1417 = vpop.xlane.xlu0 %1416
        %1418 = vadd.xlane.f32.xlu0 %v1377
        %v1419 = vpop.xlane.xlu0 %1418
        %1420 = vadd.xlane.f32.xlu0 %v1378
        %v1421 = vpop.xlane.xlu0 %1420
        %1422 = vadd.xlane.f32.xlu0 %v1379
        %v1423 = vpop.xlane.xlu0 %1422
        %1424 = vadd.xlane.f32.xlu0 %v1380
        %v1425 = vpop.xlane.xlu0 %1424
        %1426 = vadd.xlane.f32.xlu0 %v1381
        %v1427 = vpop.xlane.xlu0 %1426
        %1428 = vadd.xlane.f32.xlu0 %v1382
        %v1429 = vpop.xlane.xlu0 %1428
        %1430 = vadd.xlane.f32.xlu0 %v1383
        %v1431 = vpop.xlane.xlu0 %1430
        %1432 = vadd.xlane.f32.xlu0 %v1384
        %v1433 = vpop.xlane.xlu0 %1432
        %1434 = vadd.xlane.f32.xlu0 %v1385
        %v1435 = vpop.xlane.xlu0 %1434
        %1436 = vadd.xlane.f32.xlu0 %v1386
        %v1437 = vpop.xlane.xlu0 %1436
        %1438 = vadd.xlane.f32.xlu0 %v1387
        %v1439 = vpop.xlane.xlu0 %1438
        %1440 = vadd.xlane.f32.xlu0 %v1388
        %v1441 = vpop.xlane.xlu0 %1440
        %1442 = vadd.xlane.f32.xlu0 %v1389
        %v1443 = vpop.xlane.xlu0 %1442
        %1444 = vadd.xlane.f32.xlu0 %v1390
        %v1445 = vpop.xlane.xlu0 %1444
        %1446 = vadd.xlane.f32.xlu0 %v1391
        %v1447 = vpop.xlane.xlu0 %1446
        %1448 = vadd.xlane.f32.xlu0 %v1392
        %v1449 = vpop.xlane.xlu0 %1448
        %1450 = vadd.xlane.f32.xlu0 %v1393
        %v1451 = vpop.xlane.xlu0 %1450
        %1452 = vadd.xlane.f32.xlu0 %v1394
        %v1453 = vpop.xlane.xlu0 %1452
        %1454 = vadd.xlane.f32.xlu0 %v1395
        %v1455 = vpop.xlane.xlu0 %1454
        %1456 = vadd.xlane.f32.xlu0 %v1396
        %v1457 = vpop.xlane.xlu0 %1456
        %1458 = vadd.xlane.f32.xlu0 %v1397
        %v1459 = vpop.xlane.xlu0 %1458
        %1460 = vadd.xlane.f32.xlu0 %v1398
        %v1461 = vpop.xlane.xlu0 %1460
        %1462 = vadd.xlane.f32.xlu0 %v1399
        %v1463 = vpop.xlane.xlu0 %1462
        %1464 = vadd.xlane.f32.xlu0 %v1400
        %v1465 = vpop.xlane.xlu0 %1464
        %1466 = vadd.xlane.f32.xlu0 %v1401
        %v1467 = vpop.xlane.xlu0 %1466
        %1468 = vadd.xlane.f32.xlu0 %v1402
        %v1469 = vpop.xlane.xlu0 %1468
        %1470 = vadd.xlane.f32.xlu0 %v1403
        %v1471 = vpop.xlane.xlu0 %1470
        %1472 = vadd.xlane.f32.xlu0 %v1404
        %v1473 = vpop.xlane.xlu0 %1472
        %1474 = vadd.xlane.f32.xlu0 %v1405
        %v1475 = vpop.xlane.xlu0 %1474
        %1476 = vadd.xlane.f32.xlu0 %v1406
        %v1477 = vpop.xlane.xlu0 %1476
        %1478 = vadd.xlane.f32.xlu0 %v1407
        %v1479 = vpop.xlane.xlu0 %1478
        %1480 = vadd.xlane.f32.xlu0 %v1408
        %v1481 = vpop.xlane.xlu0 %1480
        %1482 = vadd.xlane.f32.xlu0 %v1409
        %v1483 = vpop.xlane.xlu0 %1482
        %1484 = vadd.xlane.f32.xlu0 %v1410
        %v1485 = vpop.xlane.xlu0 %1484
        %1486 = vadd.xlane.f32.xlu0 %v1411
        %v1487 = vpop.xlane.xlu0 %1486
        %vm1488 = vcmask 7168
        %v1489 = vsel %vm1488, %v1177, %v1295
        %v1490 = vsel %vm1488, %v1179, %v1297
        %v1491 = vsel %vm1488, %v1181, %v1299
        %v1492 = vsel %vm1488, %v1183, %v1301
        %v1493 = vsel %vm1488, %v1185, %v1303
        %v1494 = vsel %vm1488, %v1187, %v1305
        %v1495 = vsel %vm1488, %v1189, %v1307
        %v1496 = vsel %vm1488, %v1191, %v1309
        %v1497 = vsel %vm1488, %v1193, %v1311
        %v1498 = vsel %vm1488, %v1195, %v1313
        %v1499 = vsel %vm1488, %v1197, %v1315
        %v1500 = vsel %vm1488, %v1199, %v1317
        %v1501 = vsel %vm1488, %v1201, %v1319
        %v1502 = vsel %vm1488, %v1203, %v1321
        %v1503 = vsel %vm1488, %v1205, %v1323
        %v1504 = vsel %vm1488, %v1207, %v1325
        %v1505 = vsel %vm1488, %v1209, %v1327
        %v1506 = vsel %vm1488, %v1211, %v1329
        %v1507 = vsel %vm1488, %v1213, %v1331
        %v1508 = vsel %vm1488, %v1215, %v1333
        %v1509 = vsel %vm1488, %v1217, %v1335
        %v1510 = vsel %vm1488, %v1219, %v1337
        %v1511 = vsel %vm1488, %v1221, %v1339
        %v1512 = vsel %vm1488, %v1223, %v1341
        %v1513 = vsel %vm1488, %v1225, %v1343
        %v1514 = vsel %vm1488, %v1227, %v1345
        %v1515 = vsel %vm1488, %v1229, %v1347
        %v1516 = vsel %vm1488, %v1231, %v1349
        %v1517 = vsel %vm1488, %v1233, %v1351
        %v1518 = vsel %vm1488, %v1235, %v1353
        %v1519 = vsel %vm1488, %v1237, %v1355
        %v1520 = vsel %vm1488, %v1239, %v1357
        %v1521 = vsel %vm1488, %v1241, %v1359
        %v1522 = vsel %vm1488, %v1243, %v1361
        %v1523 = vsel %vm1488, %v1245, %v1363
        %v1524 = vsel %vm1488, %v1247, %v1365
        %v1525 = vsel %vm1488, %v1249, %v1367
        %v1526 = vsel %vm1488, %v1251, %v1369
        %vm1527 = vcmask 15360
        %v1528 = vsel %vm1527, %v1489, %v1413
        %v1529 = vsel %vm1527, %v1490, %v1415
        %v1530 = vsel %vm1527, %v1491, %v1417
        %v1531 = vsel %vm1527, %v1492, %v1419
        %v1532 = vsel %vm1527, %v1493, %v1421
        %v1533 = vsel %vm1527, %v1494, %v1423
        %v1534 = vsel %vm1527, %v1495, %v1425
        %v1535 = vsel %vm1527, %v1496, %v1427
        %v1536 = vsel %vm1527, %v1497, %v1429
        %v1537 = vsel %vm1527, %v1498, %v1431
        %v1538 = vsel %vm1527, %v1499, %v1433
        %v1539 = vsel %vm1527, %v1500, %v1435
        %v1540 = vsel %vm1527, %v1501, %v1437
        %v1541 = vsel %vm1527, %v1502, %v1439
        %v1542 = vsel %vm1527, %v1503, %v1441
        %v1543 = vsel %vm1527, %v1504, %v1443
        %v1544 = vsel %vm1527, %v1505, %v1445
        %v1545 = vsel %vm1527, %v1506, %v1447
        %v1546 = vsel %vm1527, %v1507, %v1449
        %v1547 = vsel %vm1527, %v1508, %v1451
        %v1548 = vsel %vm1527, %v1509, %v1453
        %v1549 = vsel %vm1527, %v1510, %v1455
        %v1550 = vsel %vm1527, %v1511, %v1457
        %v1551 = vsel %vm1527, %v1512, %v1459
        %v1552 = vsel %vm1527, %v1513, %v1461
        %v1553 = vsel %vm1527, %v1514, %v1463
        %v1554 = vsel %vm1527, %v1515, %v1465
        %v1555 = vsel %vm1527, %v1516, %v1467
        %v1556 = vsel %vm1527, %v1517, %v1469
        %v1557 = vsel %vm1527, %v1518, %v1471
        %v1558 = vsel %vm1527, %v1519, %v1473
        %v1559 = vsel %vm1527, %v1520, %v1475
        %v1560 = vsel %vm1527, %v1521, %v1477
        %v1561 = vsel %vm1527, %v1522, %v1479
        %v1562 = vsel %vm1527, %v1523, %v1481
        %v1563 = vsel %vm1527, %v1524, %v1483
        %v1564 = vsel %vm1527, %v1525, %v1485
        %v1565 = vsel %vm1527, %v1526, %v1487
        %v1566 = vld [vmem:[%s331] sm:$0xff]
        %v1567 = vld [vmem:[%s331 + $0x8] sm:$0xff]
        %v1568 = vld [vmem:[%s331 + $0x10] sm:$0xff]
        %v1569 = vld [vmem:[%s331 + $0x18] sm:$0xff]
        %v1570 = vld [vmem:[%s331 + $0x20] sm:$0xff]
        %v1571 = vld [vmem:[%s331 + $0x28] sm:$0xff]
        %v1572 = vld [vmem:[%s331 + $0x30] sm:$0xff]
        %v1573 = vld [vmem:[%s331 + $0x38] sm:$0xff]
        %v1574 = vld [vmem:[%s331 + $0x40] sm:$0xff]
        %v1575 = vld [vmem:[%s331 + $0x48] sm:$0xff]
        %v1576 = vld [vmem:[%s331 + $0x50] sm:$0xff]
        %v1577 = vld [vmem:[%s331 + $0x58] sm:$0xff]
        %v1578 = vld [vmem:[%s331 + $0x60] sm:$0xff]
        %v1579 = vld [vmem:[%s331 + $0x68] sm:$0xff]
        %v1580 = vld [vmem:[%s331 + $0x70] sm:$0xff]
        %v1581 = vld [vmem:[%s331 + $0x78] sm:$0xff]
        %v1582 = vld [vmem:[%s331 + $0x80] sm:$0xff]
        %v1583 = vld [vmem:[%s331 + $0x88] sm:$0xff]
        %v1584 = vld [vmem:[%s331 + $0x90] sm:$0xff]
        %v1585 = vld [vmem:[%s331 + $0x98] sm:$0xff]
        %v1586 = vld [vmem:[%s331 + $0xa0] sm:$0xff]
        %v1587 = vld [vmem:[%s331 + $0xa8] sm:$0xff]
        %v1588 = vld [vmem:[%s331 + $0xb0] sm:$0xff]
        %v1589 = vld [vmem:[%s331 + $0xb8] sm:$0xff]
        %v1590 = vld [vmem:[%s331 + $0xc0] sm:$0xff]
        %v1591 = vld [vmem:[%s331 + $0xc8] sm:$0xff]
        %v1592 = vld [vmem:[%s331 + $0xd0] sm:$0xff]
        %v1593 = vld [vmem:[%s331 + $0xd8] sm:$0xff]
        %v1594 = vld [vmem:[%s331 + $0xe0] sm:$0xff]
        %v1595 = vld [vmem:[%s331 + $0xe8] sm:$0xff]
        %v1596 = vld [vmem:[%s331 + $0xf0] sm:$0xff]
        %v1597 = vld [vmem:[%s331 + $0xf8] sm:$0xff]
        %v1598 = vld [vmem:[%s331 + $0x100] sm:$0xff]
        %v1599 = vld [vmem:[%s331 + $0x108] sm:$0xff]
        %v1600 = vld [vmem:[%s331 + $0x110] sm:$0xff]
        %v1601 = vld [vmem:[%s331 + $0x118] sm:$0xff]
        %v1602 = vld [vmem:[%s331 + $0x120] sm:$0xff]
        %v1603 = vld [vmem:[%s331 + $0x128] sm:$0xff]
        %v1604 = vadd.f32 %v1528, %v1566
        %v1605 = vadd.f32 %v1529, %v1567
        %v1606 = vadd.f32 %v1530, %v1568
        %v1607 = vadd.f32 %v1531, %v1569
        %v1608 = vadd.f32 %v1532, %v1570
        %v1609 = vadd.f32 %v1533, %v1571
        %v1610 = vadd.f32 %v1534, %v1572
        %v1611 = vadd.f32 %v1535, %v1573
        %v1612 = vadd.f32 %v1536, %v1574
        %v1613 = vadd.f32 %v1537, %v1575
        %v1614 = vadd.f32 %v1538, %v1576
        %v1615 = vadd.f32 %v1539, %v1577
        %v1616 = vadd.f32 %v1540, %v1578
        %v1617 = vadd.f32 %v1541, %v1579
        %v1618 = vadd.f32 %v1542, %v1580
        %v1619 = vadd.f32 %v1543, %v1581
        %v1620 = vadd.f32 %v1544, %v1582
        %v1621 = vadd.f32 %v1545, %v1583
        %v1622 = vadd.f32 %v1546, %v1584
        %v1623 = vadd.f32 %v1547, %v1585
        %v1624 = vadd.f32 %v1548, %v1586
        %v1625 = vadd.f32 %v1549, %v1587
        %v1626 = vadd.f32 %v1550, %v1588
        %v1627 = vadd.f32 %v1551, %v1589
        %v1628 = vadd.f32 %v1552, %v1590
        %v1629 = vadd.f32 %v1553, %v1591
        %v1630 = vadd.f32 %v1554, %v1592
        %v1631 = vadd.f32 %v1555, %v1593
        %v1632 = vadd.f32 %v1556, %v1594
        %v1633 = vadd.f32 %v1557, %v1595
        %v1634 = vadd.f32 %v1558, %v1596
        %v1635 = vadd.f32 %v1559, %v1597
        %v1636 = vadd.f32 %v1560, %v1598
        %v1637 = vadd.f32 %v1561, %v1599
        %v1638 = vadd.f32 %v1562, %v1600
        %v1639 = vadd.f32 %v1563, %v1601
        %v1640 = vadd.f32 %v1564, %v1602
        %v1641 = vadd.f32 %v1565, %v1603
        %v1642 = vxor.u32 %v1604, 2147483648
        %v1643 = vxor.u32 %v1605, 2147483648
        %v1644 = vxor.u32 %v1606, 2147483648
        %v1645 = vxor.u32 %v1607, 2147483648
        %v1646 = vxor.u32 %v1608, 2147483648
        %v1647 = vxor.u32 %v1609, 2147483648
        %v1648 = vxor.u32 %v1610, 2147483648
        %v1649 = vxor.u32 %v1611, 2147483648
        %v1650 = vxor.u32 %v1612, 2147483648
        %v1651 = vxor.u32 %v1613, 2147483648
        %v1652 = vxor.u32 %v1614, 2147483648
        %v1653 = vxor.u32 %v1615, 2147483648
        %v1654 = vxor.u32 %v1616, 2147483648
        %v1655 = vxor.u32 %v1617, 2147483648
        %v1656 = vxor.u32 %v1618, 2147483648
        %v1657 = vxor.u32 %v1619, 2147483648
        %v1658 = vxor.u32 %v1620, 2147483648
        %v1659 = vxor.u32 %v1621, 2147483648
        %v1660 = vxor.u32 %v1622, 2147483648
        %v1661 = vxor.u32 %v1623, 2147483648
        %v1662 = vxor.u32 %v1624, 2147483648
        %v1663 = vxor.u32 %v1625, 2147483648
        %v1664 = vxor.u32 %v1626, 2147483648
        %v1665 = vxor.u32 %v1627, 2147483648
        %v1666 = vxor.u32 %v1628, 2147483648
        %v1667 = vxor.u32 %v1629, 2147483648
        %v1668 = vxor.u32 %v1630, 2147483648
        %v1669 = vxor.u32 %v1631, 2147483648
        %v1670 = vxor.u32 %v1632, 2147483648
        %v1671 = vxor.u32 %v1633, 2147483648
        %v1672 = vxor.u32 %v1634, 2147483648
        %v1673 = vxor.u32 %v1635, 2147483648
        %v1674 = vxor.u32 %v1636, 2147483648
        %v1675 = vxor.u32 %v1637, 2147483648
        %v1676 = vxor.u32 %v1638, 2147483648
        %v1677 = vxor.u32 %v1639, 2147483648
        %v1678 = vxor.u32 %v1640, 2147483648
        %v1679 = vxor.u32 %v1641, 2147483648
        %v1680 = vmul.f32 %v1642, 1.442695
        %v1681 = vpow.pop %v1680
        %v1682 = vmul.f32 %v1643, 1.442695
        %v1683 = vpow.pop %v1682
        %v1684 = vmul.f32 %v1644, 1.442695
        %v1685 = vpow.pop %v1684
        %v1686 = vmul.f32 %v1645, 1.442695
        %v1687 = vpow.pop %v1686
        %v1688 = vmul.f32 %v1646, 1.442695
        %v1689 = vpow.pop %v1688
        %v1690 = vmul.f32 %v1647, 1.442695
        %v1691 = vpow.pop %v1690
        %v1692 = vmul.f32 %v1648, 1.442695
        %v1693 = vpow.pop %v1692
        %v1694 = vmul.f32 %v1649, 1.442695
        %v1695 = vpow.pop %v1694
        %v1696 = vmul.f32 %v1650, 1.442695
        %v1697 = vpow.pop %v1696
        %v1698 = vmul.f32 %v1651, 1.442695
        %v1699 = vpow.pop %v1698
        %v1700 = vmul.f32 %v1652, 1.442695
        %v1701 = vpow.pop %v1700
        %v1702 = vmul.f32 %v1653, 1.442695
        %v1703 = vpow.pop %v1702
        %v1704 = vmul.f32 %v1654, 1.442695
        %v1705 = vpow.pop %v1704
        %v1706 = vmul.f32 %v1655, 1.442695
        %v1707 = vpow.pop %v1706
        %v1708 = vmul.f32 %v1656, 1.442695
        %v1709 = vpow.pop %v1708
        %v1710 = vmul.f32 %v1657, 1.442695
        %v1711 = vpow.pop %v1710
        %v1712 = vmul.f32 %v1658, 1.442695
        %v1713 = vpow.pop %v1712
        %v1714 = vmul.f32 %v1659, 1.442695
        %v1715 = vpow.pop %v1714
        %v1716 = vmul.f32 %v1660, 1.442695
        %v1717 = vpow.pop %v1716
        %v1718 = vmul.f32 %v1661, 1.442695
        %v1719 = vpow.pop %v1718
        %v1720 = vmul.f32 %v1662, 1.442695
        %v1721 = vpow.pop %v1720
        %v1722 = vmul.f32 %v1663, 1.442695
        %v1723 = vpow.pop %v1722
        %v1724 = vmul.f32 %v1664, 1.442695
        %v1725 = vpow.pop %v1724
        %v1726 = vmul.f32 %v1665, 1.442695
        %v1727 = vpow.pop %v1726
        %v1728 = vmul.f32 %v1666, 1.442695
        %v1729 = vpow.pop %v1728
        %v1730 = vmul.f32 %v1667, 1.442695
        %v1731 = vpow.pop %v1730
        %v1732 = vmul.f32 %v1668, 1.442695
        %v1733 = vpow.pop %v1732
        %v1734 = vmul.f32 %v1669, 1.442695
        %v1735 = vpow.pop %v1734
        %v1736 = vmul.f32 %v1670, 1.442695
        %v1737 = vpow.pop %v1736
        %v1738 = vmul.f32 %v1671, 1.442695
        %v1739 = vpow.pop %v1738
        %v1740 = vmul.f32 %v1672, 1.442695
        %v1741 = vpow.pop %v1740
        %v1742 = vmul.f32 %v1673, 1.442695
        %v1743 = vpow.pop %v1742
        %v1744 = vmul.f32 %v1674, 1.442695
        %v1745 = vpow.pop %v1744
        %v1746 = vmul.f32 %v1675, 1.442695
        %v1747 = vpow.pop %v1746
        %v1748 = vmul.f32 %v1676, 1.442695
        %v1749 = vpow.pop %v1748
        %v1750 = vmul.f32 %v1677, 1.442695
        %v1751 = vpow.pop %v1750
        %v1752 = vmul.f32 %v1678, 1.442695
        %v1753 = vpow.pop %v1752
        %v1754 = vmul.f32 %v1679, 1.442695
        %v1755 = vpow.pop %v1754
        %v1756 = vadd.f32 %v1681, 1.0
        %v1757 = vadd.f32 %v1683, 1.0
        %v1758 = vadd.f32 %v1685, 1.0
        %v1759 = vadd.f32 %v1687, 1.0
        %v1760 = vadd.f32 %v1689, 1.0
        %v1761 = vadd.f32 %v1691, 1.0
        %v1762 = vadd.f32 %v1693, 1.0
        %v1763 = vadd.f32 %v1695, 1.0
        %v1764 = vadd.f32 %v1697, 1.0
        %v1765 = vadd.f32 %v1699, 1.0
        %v1766 = vadd.f32 %v1701, 1.0
        %v1767 = vadd.f32 %v1703, 1.0
        %v1768 = vadd.f32 %v1705, 1.0
        %v1769 = vadd.f32 %v1707, 1.0
        %v1770 = vadd.f32 %v1709, 1.0
        %v1771 = vadd.f32 %v1711, 1.0
        %v1772 = vadd.f32 %v1713, 1.0
        %v1773 = vadd.f32 %v1715, 1.0
        %v1774 = vadd.f32 %v1717, 1.0
        %v1775 = vadd.f32 %v1719, 1.0
        %v1776 = vadd.f32 %v1721, 1.0
        %v1777 = vadd.f32 %v1723, 1.0
        %v1778 = vadd.f32 %v1725, 1.0
        %v1779 = vadd.f32 %v1727, 1.0
        %v1780 = vadd.f32 %v1729, 1.0
        %v1781 = vadd.f32 %v1731, 1.0
        %v1782 = vadd.f32 %v1733, 1.0
        %v1783 = vadd.f32 %v1735, 1.0
        %v1784 = vadd.f32 %v1737, 1.0
        %v1785 = vadd.f32 %v1739, 1.0
        %v1786 = vadd.f32 %v1741, 1.0
        %v1787 = vadd.f32 %v1743, 1.0
        %v1788 = vadd.f32 %v1745, 1.0
        %v1789 = vadd.f32 %v1747, 1.0
        %v1790 = vadd.f32 %v1749, 1.0
        %v1791 = vadd.f32 %v1751, 1.0
        %v1792 = vadd.f32 %v1753, 1.0
        %v1793 = vadd.f32 %v1755, 1.0
        %v1794 = vrcp.pop %v1756
        %v1795 = vmul.f32 1.0, %v1794
        %v1796 = vrcp.pop %v1757
        %v1797 = vmul.f32 1.0, %v1796
        %v1798 = vrcp.pop %v1758
        %v1799 = vmul.f32 1.0, %v1798
        %v1800 = vrcp.pop %v1759
        %v1801 = vmul.f32 1.0, %v1800
        %v1802 = vrcp.pop %v1760
        %v1803 = vmul.f32 1.0, %v1802
        %v1804 = vrcp.pop %v1761
        %v1805 = vmul.f32 1.0, %v1804
        %v1806 = vrcp.pop %v1762
        %v1807 = vmul.f32 1.0, %v1806
        %v1808 = vrcp.pop %v1763
        %v1809 = vmul.f32 1.0, %v1808
        %v1810 = vrcp.pop %v1764
        %v1811 = vmul.f32 1.0, %v1810
        %v1812 = vrcp.pop %v1765
        %v1813 = vmul.f32 1.0, %v1812
        %v1814 = vrcp.pop %v1766
        %v1815 = vmul.f32 1.0, %v1814
        %v1816 = vrcp.pop %v1767
        %v1817 = vmul.f32 1.0, %v1816
        %v1818 = vrcp.pop %v1768
        %v1819 = vmul.f32 1.0, %v1818
        %v1820 = vrcp.pop %v1769
        %v1821 = vmul.f32 1.0, %v1820
        %v1822 = vrcp.pop %v1770
        %v1823 = vmul.f32 1.0, %v1822
        %v1824 = vrcp.pop %v1771
        %v1825 = vmul.f32 1.0, %v1824
        %v1826 = vrcp.pop %v1772
        %v1827 = vmul.f32 1.0, %v1826
        %v1828 = vrcp.pop %v1773
        %v1829 = vmul.f32 1.0, %v1828
        %v1830 = vrcp.pop %v1774
        %v1831 = vmul.f32 1.0, %v1830
        %v1832 = vrcp.pop %v1775
        %v1833 = vmul.f32 1.0, %v1832
        %v1834 = vrcp.pop %v1776
        %v1835 = vmul.f32 1.0, %v1834
        %v1836 = vrcp.pop %v1777
        %v1837 = vmul.f32 1.0, %v1836
        %v1838 = vrcp.pop %v1778
        %v1839 = vmul.f32 1.0, %v1838
        %v1840 = vrcp.pop %v1779
        %v1841 = vmul.f32 1.0, %v1840
        %v1842 = vrcp.pop %v1780
        %v1843 = vmul.f32 1.0, %v1842
        %v1844 = vrcp.pop %v1781
        %v1845 = vmul.f32 1.0, %v1844
        %v1846 = vrcp.pop %v1782
        %v1847 = vmul.f32 1.0, %v1846
        %v1848 = vrcp.pop %v1783
        %v1849 = vmul.f32 1.0, %v1848
        %v1850 = vrcp.pop %v1784
        %v1851 = vmul.f32 1.0, %v1850
        %v1852 = vrcp.pop %v1785
        %v1853 = vmul.f32 1.0, %v1852
        %v1854 = vrcp.pop %v1786
        %v1855 = vmul.f32 1.0, %v1854
        %v1856 = vrcp.pop %v1787
        %v1857 = vmul.f32 1.0, %v1856
        %v1858 = vrcp.pop %v1788
        %v1859 = vmul.f32 1.0, %v1858
        %v1860 = vrcp.pop %v1789
        %v1861 = vmul.f32 1.0, %v1860
        %v1862 = vrcp.pop %v1790
        %v1863 = vmul.f32 1.0, %v1862
        %v1864 = vrcp.pop %v1791
        %v1865 = vmul.f32 1.0, %v1864
        %v1866 = vrcp.pop %v1792
        %v1867 = vmul.f32 1.0, %v1866
        %v1868 = vrcp.pop %v1793
        %v1869 = vmul.f32 1.0, %v1868
        %vm1870 = vcmask 23552
        %1871 = vst.msk [vmem:[%s308] sm:$0xff] %vm1870, %v1795
        %1872 = vst.msk [vmem:[%s308 + $0x8] sm:$0xff] %vm1870, %v1797
        %1873 = vst.msk [vmem:[%s308 + $0x10] sm:$0xff] %vm1870, %v1799
        %1874 = vst.msk [vmem:[%s308 + $0x18] sm:$0xff] %vm1870, %v1801
        %1875 = vst.msk [vmem:[%s308 + $0x20] sm:$0xff] %vm1870, %v1803
        %1876 = vst.msk [vmem:[%s308 + $0x28] sm:$0xff] %vm1870, %v1805
        %1877 = vst.msk [vmem:[%s308 + $0x30] sm:$0xff] %vm1870, %v1807
        %1878 = vst.msk [vmem:[%s308 + $0x38] sm:$0xff] %vm1870, %v1809
        %1879 = vst.msk [vmem:[%s308 + $0x40] sm:$0xff] %vm1870, %v1811
        %1880 = vst.msk [vmem:[%s308 + $0x48] sm:$0xff] %vm1870, %v1813
        %1881 = vst.msk [vmem:[%s308 + $0x50] sm:$0xff] %vm1870, %v1815
        %1882 = vst.msk [vmem:[%s308 + $0x58] sm:$0xff] %vm1870, %v1817
        %1883 = vst.msk [vmem:[%s308 + $0x60] sm:$0xff] %vm1870, %v1819
        %1884 = vst.msk [vmem:[%s308 + $0x68] sm:$0xff] %vm1870, %v1821
        %1885 = vst.msk [vmem:[%s308 + $0x70] sm:$0xff] %vm1870, %v1823
        %1886 = vst.msk [vmem:[%s308 + $0x78] sm:$0xff] %vm1870, %v1825
        %1887 = vst.msk [vmem:[%s308 + $0x80] sm:$0xff] %vm1870, %v1827
        %1888 = vst.msk [vmem:[%s308 + $0x88] sm:$0xff] %vm1870, %v1829
        %1889 = vst.msk [vmem:[%s308 + $0x90] sm:$0xff] %vm1870, %v1831
        %1890 = vst.msk [vmem:[%s308 + $0x98] sm:$0xff] %vm1870, %v1833
        %1891 = vst.msk [vmem:[%s308 + $0xa0] sm:$0xff] %vm1870, %v1835
        %1892 = vst.msk [vmem:[%s308 + $0xa8] sm:$0xff] %vm1870, %v1837
        %1893 = vst.msk [vmem:[%s308 + $0xb0] sm:$0xff] %vm1870, %v1839
        %1894 = vst.msk [vmem:[%s308 + $0xb8] sm:$0xff] %vm1870, %v1841
        %1895 = vst.msk [vmem:[%s308 + $0xc0] sm:$0xff] %vm1870, %v1843
        %1896 = vst.msk [vmem:[%s308 + $0xc8] sm:$0xff] %vm1870, %v1845
        %1897 = vst.msk [vmem:[%s308 + $0xd0] sm:$0xff] %vm1870, %v1847
        %1898 = vst.msk [vmem:[%s308 + $0xd8] sm:$0xff] %vm1870, %v1849
        %1899 = vst.msk [vmem:[%s308 + $0xe0] sm:$0xff] %vm1870, %v1851
        %1900 = vst.msk [vmem:[%s308 + $0xe8] sm:$0xff] %vm1870, %v1853
        %1901 = vst.msk [vmem:[%s308 + $0xf0] sm:$0xff] %vm1870, %v1855
        %1902 = vst.msk [vmem:[%s308 + $0xf8] sm:$0xff] %vm1870, %v1857
        %1903 = vst.msk [vmem:[%s308 + $0x100] sm:$0xff] %vm1870, %v1859
        %1904 = vst.msk [vmem:[%s308 + $0x108] sm:$0xff] %vm1870, %v1861
        %1905 = vst.msk [vmem:[%s308 + $0x110] sm:$0xff] %vm1870, %v1863
        %1906 = vst.msk [vmem:[%s308 + $0x118] sm:$0xff] %vm1870, %v1865
        %1907 = vst.msk [vmem:[%s308 + $0x120] sm:$0xff] %vm1870, %v1867
        %1908 = vst.msk [vmem:[%s308 + $0x128] sm:$0xff] %vm1870, %v1869
        %s1909 = sand.u32 %s183, 1
        %s1910 = sand.u32 %s183, 1
        %s1911 = smul.addr %s1910, 304
        %s1912 = scalar_lea.vmem [#allocation2], %s1911
        // Predicated region
        $region49: #{tpu_custom_call.1} parent=47 // pred_check
          %p1913 = pneg %p193
        $region50: #{tpu_custom_call.1} parent=47 // pred_check_branch
          %1915 = sbr.rel (%p1913) target = $region52
        $region51: #{tpu_custom_call.1} parent=47 // pred_region
          %s1916 = smul.u32 38, %s18
          %s1917 = ssub.s32 75, %s1916
          %p1918 = scmp.lt.s32.totalorder %s1917, 38
          %s1919 = scalar_select %p1918, %s1917, 38
          %s1920 = smul.u32 128, %s1919
          %p1921 = scmp.ne.s32.totalorder 0, %s1920
          %s1922 = smul.addr %s1916, 8
          %s1923 = scalar_lea.vmem %s7, %s1922
          // Predicated region
          $region53: #{tpu_custom_call.1} parent=51 // pred_check
            %p1924 = pneg %p1921
          $region54: #{tpu_custom_call.1} parent=51 // pred_check_branch
            %1926 = sbr.rel (%p1924) target = $region56
          $region55: #{tpu_custom_call.1} parent=51 // pred_region
            // Predicated region
            $region57: #{tpu_custom_call.1} parent=55 // pred_check
              _
            $region58: #{tpu_custom_call.1} parent=55 // pred_check_branch
              %1928 = sbr.rel (0) target = $region60
            $region59: #{tpu_custom_call.1} parent=55 // pred_region
              // Predicated region
              $region79: #{tpu_custom_call.1} parent=59 // pred_check
                _
              $region80: #{tpu_custom_call.1} parent=59 // pred_check_branch
                %2053 = sbr.rel (0) target = $region82
              $region81: #{tpu_custom_call.1} parent=59 // pred_region
                %s2054 = sdiv.u32.pop %s1919, 38
                %s2055 = srem.u32.pop %s1919, 38
                // While loop
                $region83: #{tpu_custom_call.1} parent=81 // loop_pre_header
                  _
                $region84: #{tpu_custom_call.1} parent=81 // loop_header
                  %s2057 = sphi 0, %s2059
                  %p2058 = scmp.ge.s32.totalorder %s2057, %s2054
                  %s2062 = sphi 0, %s2143
                  %s2063 = sphi %s1912, %s2146
                  %s2064 = sphi %s1923, %s2147
                $region85: #{tpu_custom_call.1} parent=81 // loop_header_branch
                  %2061 = sbr.rel (%p2058) target = $region89
                $region86: #{tpu_custom_call.1} parent=81 // loop_body
                  %v2065 = vld [vmem:[%s2063] sm:$0xff]
                  %2066 = vst [vmem:[%s2064] sm:$0xff] %v2065
                  %v2067 = vld [vmem:[%s2063 + $0x8] sm:$0xff]
                  %2068 = vst [vmem:[%s2064 + $0x8] sm:$0xff] %v2067
                  %v2069 = vld [vmem:[%s2063 + $0x10] sm:$0xff]
                  %2070 = vst [vmem:[%s2064 + $0x10] sm:$0xff] %v2069
                  %v2071 = vld [vmem:[%s2063 + $0x18] sm:$0xff]
                  %2072 = vst [vmem:[%s2064 + $0x18] sm:$0xff] %v2071
                  %v2073 = vld [vmem:[%s2063 + $0x20] sm:$0xff]
                  %2074 = vst [vmem:[%s2064 + $0x20] sm:$0xff] %v2073
                  %v2075 = vld [vmem:[%s2063 + $0x28] sm:$0xff]
                  %2076 = vst [vmem:[%s2064 + $0x28] sm:$0xff] %v2075
                  %v2077 = vld [vmem:[%s2063 + $0x30] sm:$0xff]
                  %2078 = vst [vmem:[%s2064 + $0x30] sm:$0xff] %v2077
                  %v2079 = vld [vmem:[%s2063 + $0x38] sm:$0xff]
                  %2080 = vst [vmem:[%s2064 + $0x38] sm:$0xff] %v2079
                  %v2081 = vld [vmem:[%s2063 + $0x40] sm:$0xff]
                  %2082 = vst [vmem:[%s2064 + $0x40] sm:$0xff] %v2081
                  %v2083 = vld [vmem:[%s2063 + $0x48] sm:$0xff]
                  %2084 = vst [vmem:[%s2064 + $0x48] sm:$0xff] %v2083
                  %v2085 = vld [vmem:[%s2063 + $0x50] sm:$0xff]
                  %2086 = vst [vmem:[%s2064 + $0x50] sm:$0xff] %v2085
                  %v2087 = vld [vmem:[%s2063 + $0x58] sm:$0xff]
                  %2088 = vst [vmem:[%s2064 + $0x58] sm:$0xff] %v2087
                  %v2089 = vld [vmem:[%s2063 + $0x60] sm:$0xff]
                  %2090 = vst [vmem:[%s2064 + $0x60] sm:$0xff] %v2089
                  %v2091 = vld [vmem:[%s2063 + $0x68] sm:$0xff]
                  %2092 = vst [vmem:[%s2064 + $0x68] sm:$0xff] %v2091
                  %v2093 = vld [vmem:[%s2063 + $0x70] sm:$0xff]
                  %2094 = vst [vmem:[%s2064 + $0x70] sm:$0xff] %v2093
                  %v2095 = vld [vmem:[%s2063 + $0x78] sm:$0xff]
                  %2096 = vst [vmem:[%s2064 + $0x78] sm:$0xff] %v2095
                  %v2097 = vld [vmem:[%s2063 + $0x80] sm:$0xff]
                  %2098 = vst [vmem:[%s2064 + $0x80] sm:$0xff] %v2097
                  %v2099 = vld [vmem:[%s2063 + $0x88] sm:$0xff]
                  %2100 = vst [vmem:[%s2064 + $0x88] sm:$0xff] %v2099
                  %v2101 = vld [vmem:[%s2063 + $0x90] sm:$0xff]
                  %2102 = vst [vmem:[%s2064 + $0x90] sm:$0xff] %v2101
                  %v2103 = vld [vmem:[%s2063 + $0x98] sm:$0xff]
                  %2104 = vst [vmem:[%s2064 + $0x98] sm:$0xff] %v2103
                  %v2105 = vld [vmem:[%s2063 + $0xa0] sm:$0xff]
                  %2106 = vst [vmem:[%s2064 + $0xa0] sm:$0xff] %v2105
                  %v2107 = vld [vmem:[%s2063 + $0xa8] sm:$0xff]
                  %2108 = vst [vmem:[%s2064 + $0xa8] sm:$0xff] %v2107
                  %v2109 = vld [vmem:[%s2063 + $0xb0] sm:$0xff]
                  %2110 = vst [vmem:[%s2064 + $0xb0] sm:$0xff] %v2109
                  %v2111 = vld [vmem:[%s2063 + $0xb8] sm:$0xff]
                  %2112 = vst [vmem:[%s2064 + $0xb8] sm:$0xff] %v2111
                  %v2113 = vld [vmem:[%s2063 + $0xc0] sm:$0xff]
                  %2114 = vst [vmem:[%s2064 + $0xc0] sm:$0xff] %v2113
                  %v2115 = vld [vmem:[%s2063 + $0xc8] sm:$0xff]
                  %2116 = vst [vmem:[%s2064 + $0xc8] sm:$0xff] %v2115
                  %v2117 = vld [vmem:[%s2063 + $0xd0] sm:$0xff]
                  %2118 = vst [vmem:[%s2064 + $0xd0] sm:$0xff] %v2117
                  %v2119 = vld [vmem:[%s2063 + $0xd8] sm:$0xff]
                  %2120 = vst [vmem:[%s2064 + $0xd8] sm:$0xff] %v2119
                  %v2121 = vld [vmem:[%s2063 + $0xe0] sm:$0xff]
                  %2122 = vst [vmem:[%s2064 + $0xe0] sm:$0xff] %v2121
                  %v2123 = vld [vmem:[%s2063 + $0xe8] sm:$0xff]
                  %2124 = vst [vmem:[%s2064 + $0xe8] sm:$0xff] %v2123
                  %v2125 = vld [vmem:[%s2063 + $0xf0] sm:$0xff]
                  %2126 = vst [vmem:[%s2064 + $0xf0] sm:$0xff] %v2125
                  %v2127 = vld [vmem:[%s2063 + $0xf8] sm:$0xff]
                  %2128 = vst [vmem:[%s2064 + $0xf8] sm:$0xff] %v2127
                  %v2129 = vld [vmem:[%s2063 + $0x100] sm:$0xff]
                  %2130 = vst [vmem:[%s2064 + $0x100] sm:$0xff] %v2129
                  %v2131 = vld [vmem:[%s2063 + $0x108] sm:$0xff]
                  %2132 = vst [vmem:[%s2064 + $0x108] sm:$0xff] %v2131
                  %v2133 = vld [vmem:[%s2063 + $0x110] sm:$0xff]
                  %2134 = vst [vmem:[%s2064 + $0x110] sm:$0xff] %v2133
                  %v2135 = vld [vmem:[%s2063 + $0x118] sm:$0xff]
                  %2136 = vst [vmem:[%s2064 + $0x118] sm:$0xff] %v2135
                  %v2137 = vld [vmem:[%s2063 + $0x120] sm:$0xff]
                  %2138 = vst [vmem:[%s2064 + $0x120] sm:$0xff] %v2137
                  %v2139 = vld [vmem:[%s2063 + $0x128] sm:$0xff]
                  %2140 = vst [vmem:[%s2064 + $0x128] sm:$0xff] %v2139
                  %s2141 = sadd.s32 1, %s2062
                  %p2142 = scmp.ge.s32.totalorder %s2141, %s2054
                  %s2143 = scalar_select %p2142, 0, %s2141
                  %s2144 = smul.u32 %s2143, 304
                  %s2145 = smul.u32 %s2143, 304
                  %s2146 = scalar_lea.vmem %s1912, %s2144 [#allocation2]
                  %s2147 = scalar_lea.vmem %s1923, %s2145
                $region87: #{tpu_custom_call.1} parent=81 // loop_footer
                  %s2059 = sadd.s32 %s2057, 1
                $region88: #{tpu_custom_call.1} parent=81 // loop_footer_branch
                  %2056 = sbr.rel target = $region84
                $region89: #{tpu_custom_call.1} parent=81 // loop_exit
                  _
                %s2148 = sdiv.u32.pop %s1919, 38
                %s2149 = srem.u32.pop %s1919, 38
                %s2150 = smul.u32 %s2148, 38
                %s2151 = smul.u32 8, %s2150
                %s2152 = scalar_lea.vmem %s1912, %s2151 [#allocation2]
                %s2153 = smul.u32 8, %s2150
                %s2154 = scalar_lea.vmem %s1923, %s2153
                // While loop
                $region90: #{tpu_custom_call.1} parent=81 // loop_pre_header
                  _
                $region91: #{tpu_custom_call.1} parent=81 // loop_header
                  %s2156 = sphi 0, %s2158
                  %p2157 = scmp.ge.s32.totalorder %s2156, %s2149
                  %s2161 = sphi 0, %s2168
                  %s2162 = sphi %s2152, %s2171
                  %s2163 = sphi %s2154, %s2172
                $region92: #{tpu_custom_call.1} parent=81 // loop_header_branch
                  %2160 = sbr.rel (%p2157) target = $region96
                $region93: #{tpu_custom_call.1} parent=81 // loop_body
                  %v2164 = vld [vmem:[%s2162] sm:$0xff]
                  %2165 = vst [vmem:[%s2163] sm:$0xff] %v2164
                  %s2166 = sadd.s32 1, %s2161
                  %p2167 = scmp.ge.s32.totalorder %s2166, %s2149
                  %s2168 = scalar_select %p2167, 0, %s2166
                  %s2169 = smul.u32 %s2168, 8
                  %s2170 = smul.u32 %s2168, 8
                  %s2171 = scalar_lea.vmem %s2152, %s2169 [#allocation2]
                  %s2172 = scalar_lea.vmem %s2154, %s2170
                $region94: #{tpu_custom_call.1} parent=81 // loop_footer
                  %s2158 = sadd.s32 %s2156, 1
                $region95: #{tpu_custom_call.1} parent=81 // loop_footer_branch
                  %2155 = sbr.rel target = $region91
                $region96: #{tpu_custom_call.1} parent=81 // loop_exit
                  _
              $region82: #{tpu_custom_call.1} parent=59 // pred_fallthru
                _
              // Predicated region
              $region97: #{tpu_custom_call.1} parent=59 // pred_check
                _
              $region98: #{tpu_custom_call.1} parent=59 // pred_check_branch
                %2174 = sbr.rel target = $region100
              $region99: #{tpu_custom_call.1} parent=59 // pred_region
                _
              $region100: #{tpu_custom_call.1} parent=59 // pred_fallthru
                _
            $region60: #{tpu_custom_call.1} parent=55 // pred_fallthru
              _
            // Predicated region
            $region61: #{tpu_custom_call.1} parent=55 // pred_check
              _
            $region62: #{tpu_custom_call.1} parent=55 // pred_check_branch
              %1930 = sbr.rel target = $region64
            $region63: #{tpu_custom_call.1} parent=55 // pred_region
              %s1932 = ssub.s32 256, 1
              %s1933 = sdiv.u32.pop %s1919, 38
              %s1934 = srem.u32.pop %s1919, 38
              // While loop
              $region65: #{tpu_custom_call.1} parent=63 // loop_pre_header
                _
              $region66: #{tpu_custom_call.1} parent=63 // loop_header
                %s1936 = sphi 0, %s1938
                %p1937 = scmp.ge.s32.totalorder %s1936, %s1933
                %s1941 = sphi 0, %s2022
                %s1942 = sphi %s1912, %s2025
                %s1943 = sphi %s1923, %s2026
              $region67: #{tpu_custom_call.1} parent=63 // loop_header_branch
                %1940 = sbr.rel (%p1937) target = $region71
              $region68: #{tpu_custom_call.1} parent=63 // loop_body
                %v1944 = vld [vmem:[%s1942] sm:%s1932]
                %1945 = vst [vmem:[%s1943] sm:%s1932] %v1944
                %v1946 = vld [vmem:[%s1942 + $0x8] sm:%s1932]
                %1947 = vst [vmem:[%s1943 + $0x8] sm:%s1932] %v1946
                %v1948 = vld [vmem:[%s1942 + $0x10] sm:%s1932]
                %1949 = vst [vmem:[%s1943 + $0x10] sm:%s1932] %v1948
                %v1950 = vld [vmem:[%s1942 + $0x18] sm:%s1932]
                %1951 = vst [vmem:[%s1943 + $0x18] sm:%s1932] %v1950
                %v1952 = vld [vmem:[%s1942 + $0x20] sm:%s1932]
                %1953 = vst [vmem:[%s1943 + $0x20] sm:%s1932] %v1952
                %v1954 = vld [vmem:[%s1942 + $0x28] sm:%s1932]
                %1955 = vst [vmem:[%s1943 + $0x28] sm:%s1932] %v1954
                %v1956 = vld [vmem:[%s1942 + $0x30] sm:%s1932]
                %1957 = vst [vmem:[%s1943 + $0x30] sm:%s1932] %v1956
                %v1958 = vld [vmem:[%s1942 + $0x38] sm:%s1932]
                %1959 = vst [vmem:[%s1943 + $0x38] sm:%s1932] %v1958
                %v1960 = vld [vmem:[%s1942 + $0x40] sm:%s1932]
                %1961 = vst [vmem:[%s1943 + $0x40] sm:%s1932] %v1960
                %v1962 = vld [vmem:[%s1942 + $0x48] sm:%s1932]
                %1963 = vst [vmem:[%s1943 + $0x48] sm:%s1932] %v1962
                %v1964 = vld [vmem:[%s1942 + $0x50] sm:%s1932]
                %1965 = vst [vmem:[%s1943 + $0x50] sm:%s1932] %v1964
                %v1966 = vld [vmem:[%s1942 + $0x58] sm:%s1932]
                %1967 = vst [vmem:[%s1943 + $0x58] sm:%s1932] %v1966
                %v1968 = vld [vmem:[%s1942 + $0x60] sm:%s1932]
                %1969 = vst [vmem:[%s1943 + $0x60] sm:%s1932] %v1968
                %v1970 = vld [vmem:[%s1942 + $0x68] sm:%s1932]
                %1971 = vst [vmem:[%s1943 + $0x68] sm:%s1932] %v1970
                %v1972 = vld [vmem:[%s1942 + $0x70] sm:%s1932]
                %1973 = vst [vmem:[%s1943 + $0x70] sm:%s1932] %v1972
                %v1974 = vld [vmem:[%s1942 + $0x78] sm:%s1932]
                %1975 = vst [vmem:[%s1943 + $0x78] sm:%s1932] %v1974
                %v1976 = vld [vmem:[%s1942 + $0x80] sm:%s1932]
                %1977 = vst [vmem:[%s1943 + $0x80] sm:%s1932] %v1976
                %v1978 = vld [vmem:[%s1942 + $0x88] sm:%s1932]
                %1979 = vst [vmem:[%s1943 + $0x88] sm:%s1932] %v1978
                %v1980 = vld [vmem:[%s1942 + $0x90] sm:%s1932]
                %1981 = vst [vmem:[%s1943 + $0x90] sm:%s1932] %v1980
                %v1982 = vld [vmem:[%s1942 + $0x98] sm:%s1932]
                %1983 = vst [vmem:[%s1943 + $0x98] sm:%s1932] %v1982
                %v1984 = vld [vmem:[%s1942 + $0xa0] sm:%s1932]
                %1985 = vst [vmem:[%s1943 + $0xa0] sm:%s1932] %v1984
                %v1986 = vld [vmem:[%s1942 + $0xa8] sm:%s1932]
                %1987 = vst [vmem:[%s1943 + $0xa8] sm:%s1932] %v1986
                %v1988 = vld [vmem:[%s1942 + $0xb0] sm:%s1932]
                %1989 = vst [vmem:[%s1943 + $0xb0] sm:%s1932] %v1988
                %v1990 = vld [vmem:[%s1942 + $0xb8] sm:%s1932]
                %1991 = vst [vmem:[%s1943 + $0xb8] sm:%s1932] %v1990
                %v1992 = vld [vmem:[%s1942 + $0xc0] sm:%s1932]
                %1993 = vst [vmem:[%s1943 + $0xc0] sm:%s1932] %v1992
                %v1994 = vld [vmem:[%s1942 + $0xc8] sm:%s1932]
                %1995 = vst [vmem:[%s1943 + $0xc8] sm:%s1932] %v1994
                %v1996 = vld [vmem:[%s1942 + $0xd0] sm:%s1932]
                %1997 = vst [vmem:[%s1943 + $0xd0] sm:%s1932] %v1996
                %v1998 = vld [vmem:[%s1942 + $0xd8] sm:%s1932]
                %1999 = vst [vmem:[%s1943 + $0xd8] sm:%s1932] %v1998
                %v2000 = vld [vmem:[%s1942 + $0xe0] sm:%s1932]
                %2001 = vst [vmem:[%s1943 + $0xe0] sm:%s1932] %v2000
                %v2002 = vld [vmem:[%s1942 + $0xe8] sm:%s1932]
                %2003 = vst [vmem:[%s1943 + $0xe8] sm:%s1932] %v2002
                %v2004 = vld [vmem:[%s1942 + $0xf0] sm:%s1932]
                %2005 = vst [vmem:[%s1943 + $0xf0] sm:%s1932] %v2004
                %v2006 = vld [vmem:[%s1942 + $0xf8] sm:%s1932]
                %2007 = vst [vmem:[%s1943 + $0xf8] sm:%s1932] %v2006
                %v2008 = vld [vmem:[%s1942 + $0x100] sm:%s1932]
                %2009 = vst [vmem:[%s1943 + $0x100] sm:%s1932] %v2008
                %v2010 = vld [vmem:[%s1942 + $0x108] sm:%s1932]
                %2011 = vst [vmem:[%s1943 + $0x108] sm:%s1932] %v2010
                %v2012 = vld [vmem:[%s1942 + $0x110] sm:%s1932]
                %2013 = vst [vmem:[%s1943 + $0x110] sm:%s1932] %v2012
                %v2014 = vld [vmem:[%s1942 + $0x118] sm:%s1932]
                %2015 = vst [vmem:[%s1943 + $0x118] sm:%s1932] %v2014
                %v2016 = vld [vmem:[%s1942 + $0x120] sm:%s1932]
                %2017 = vst [vmem:[%s1943 + $0x120] sm:%s1932] %v2016
                %v2018 = vld [vmem:[%s1942 + $0x128] sm:%s1932]
                %2019 = vst [vmem:[%s1943 + $0x128] sm:%s1932] %v2018
                %s2020 = sadd.s32 1, %s1941
                %p2021 = scmp.ge.s32.totalorder %s2020, %s1933
                %s2022 = scalar_select %p2021, 0, %s2020
                %s2023 = smul.u32 %s2022, 304
                %s2024 = smul.u32 %s2022, 304
                %s2025 = scalar_lea.vmem %s1912, %s2023 [#allocation2]
                %s2026 = scalar_lea.vmem %s1923, %s2024
              $region69: #{tpu_custom_call.1} parent=63 // loop_footer
                %s1938 = sadd.s32 %s1936, 1
              $region70: #{tpu_custom_call.1} parent=63 // loop_footer_branch
                %1935 = sbr.rel target = $region66
              $region71: #{tpu_custom_call.1} parent=63 // loop_exit
                _
              %s2027 = sdiv.u32.pop %s1919, 38
              %s2028 = srem.u32.pop %s1919, 38
              %s2029 = smul.u32 %s2027, 38
              %s2030 = smul.u32 8, %s2029
              %s2031 = scalar_lea.vmem %s1912, %s2030 [#allocation2]
              %s2032 = smul.u32 8, %s2029
              %s2033 = scalar_lea.vmem %s1923, %s2032
              // While loop
              $region72: #{tpu_custom_call.1} parent=63 // loop_pre_header
                _
              $region73: #{tpu_custom_call.1} parent=63 // loop_header
                %s2035 = sphi 0, %s2037
                %p2036 = scmp.ge.s32.totalorder %s2035, %s2028
                %s2040 = sphi 0, %s2047
                %s2041 = sphi %s2031, %s2050
                %s2042 = sphi %s2033, %s2051
              $region74: #{tpu_custom_call.1} parent=63 // loop_header_branch
                %2039 = sbr.rel (%p2036) target = $region78
              $region75: #{tpu_custom_call.1} parent=63 // loop_body
                %v2043 = vld [vmem:[%s2041] sm:%s1932]
                %2044 = vst [vmem:[%s2042] sm:%s1932] %v2043
                %s2045 = sadd.s32 1, %s2040
                %p2046 = scmp.ge.s32.totalorder %s2045, %s2028
                %s2047 = scalar_select %p2046, 0, %s2045
                %s2048 = smul.u32 %s2047, 8
                %s2049 = smul.u32 %s2047, 8
                %s2050 = scalar_lea.vmem %s2031, %s2048 [#allocation2]
                %s2051 = scalar_lea.vmem %s2033, %s2049
              $region76: #{tpu_custom_call.1} parent=63 // loop_footer
                %s2037 = sadd.s32 %s2035, 1
              $region77: #{tpu_custom_call.1} parent=63 // loop_footer_branch
                %2034 = sbr.rel target = $region73
              $region78: #{tpu_custom_call.1} parent=63 // loop_exit
                _
            $region64: #{tpu_custom_call.1} parent=55 // pred_fallthru
              _
          $region56: #{tpu_custom_call.1} parent=51 // pred_fallthru
            _
          %2175 = vnop
        $region52: #{tpu_custom_call.1} parent=47 // pred_fallthru
          _
      $region48: #{tpu_custom_call.1} parent=5 // pred_fallthru
        _
      %p2176 = scmp.le.s32.totalorder 2, %s13
      // Predicated region
      $region101: #{tpu_custom_call.1} parent=5 // pred_check
        %p2177 = pneg %p2176
      $region102: #{tpu_custom_call.1} parent=5 // pred_check_branch
        %2179 = sbr.rel (%p2177) target = $region104
      $region103: #{tpu_custom_call.1} parent=5 // pred_region
        %s2180 = ssub.s32 %s13, 2
        // Predicated region
        $region105: #{tpu_custom_call.1} parent=103 // pred_check
          %p2181 = pneg %p199
        $region106: #{tpu_custom_call.1} parent=103 // pred_check_branch
          %2183 = sbr.rel (%p2181) target = $region108
        $region107: #{tpu_custom_call.1} parent=103 // pred_region
          %s2184 = sand.u32 %s184, 1
          %s2185 = sand.u32 %s184, 1
          %s2186 = smul.addr %s2185, 304
          %s2187 = scalar_lea.vmem [#allocation2], %s2186
        $region108: #{tpu_custom_call.1} parent=103 // pred_fallthru
          _
      $region104: #{tpu_custom_call.1} parent=5 // pred_fallthru
        _
    $region6: #{tpu_custom_call.1} parent=1 // loop_footer
      %s17 = sadd.s32 1, %s13
    $region7: #{tpu_custom_call.1} parent=1 // loop_footer_branch
      %12 = sbr.rel target = $region3
    $region8: #{tpu_custom_call.1} parent=1 // loop_exit
      _

</llo_original>
